<compile_context>
chip_gen: v6e
topology: v6e:2x2x1
jax: 0.10.0
libtpu: 0.0.40
codegen_flags: <defaults>
</compile_context>

<pallas_src>
import math
import functools

import jax
import jax.numpy as jnp
import numpy as np
from jax import lax
from jax.experimental import pallas as pl
from jax.experimental.pallas import tpu as pltpu


# --------------------------------------------------------------------------- #
# Kernel
# --------------------------------------------------------------------------- #
def attn_kernel(dec_ref, enc_ref, wd_ref, we_ref, b_ref, v_ref,
                out_ref, scores_ref, *, chunk_t):
    """dec:(bB,H) bf16 | enc:(T,bB,H) bf16 | wd/we:(H,H) bf16 | b/v:(1,H) f32 |
    out:(bB,T) f32 | scores scratch:(T,bB) f32."""
    T, bB, H = enc_ref.shape
    n_chunks = T // chunk_t

    # Decoder projection + bias, once per batch tile (bf16 MXU, f32 accumulate).
    dec_proj = jnp.dot(dec_ref[...], wd_ref[...],
                       preferred_element_type=jnp.float32) + b_ref[...]      # (bB, H) f32
    v_row = v_ref[...]                                                       # (1, H)  f32

    def compute_chunk(t0):
        enc_c = enc_ref[pl.ds(t0, chunk_t), :, :]                            # (cT,bB,H) bf16
        # Single flat (cT*bB, H) @ (H, H) matmul keeps the MXU fed.
        proj = jnp.dot(enc_c.reshape(chunk_t * bB, H), we_ref[...],
                       preferred_element_type=jnp.float32)
        proj = proj.reshape(chunk_t, bB, H)
        energy = jnp.tanh(proj + dec_proj[None, :, :])                       # (cT,bB,H) f32
        scores_ref[pl.ds(t0, chunk_t), :] = jnp.sum(
            energy * v_row[None, :, :], axis=-1)                             # (cT, bB)

    if n_chunks == 1:
        compute_chunk(0)
    else:
        def body(c, carry):
            compute_chunk(pl.multiple_of(c * chunk_t, chunk_t))
            return carry
        lax.fori_loop(0, n_chunks, body, 0, unroll=(n_chunks <= 8))

    # Softmax over T (tiny (bB, T) matrix; exact divide so rows sum to exactly 1).
    scores = scores_ref[...].T                                               # (bB, T) lane-dense
    scores = scores - jnp.max(scores, axis=-1, keepdims=True)
    e = jnp.exp(scores)
    out_ref[...] = (e / jnp.sum(e, axis=-1, keepdims=True)).astype(out_ref.dtype)


# --------------------------------------------------------------------------- #
# Tiling / VMEM heuristics
# --------------------------------------------------------------------------- #
def _vmem_budget_and_limit():
    """Returns (planning budget, vmem_limit_bytes) from the real chip's VMEM size.
    Fallback assumes the smallest VMEM in the fleet (v7x: 64 MiB per TC)."""
    phys = None
    try:
        info = pltpu.get_tpu_info()
        for name in ("vmem_capacity_bytes", "vmem_size_bytes", "vmem_bytes"):
            phys = getattr(info, name, None)
            if phys:
                break
    except Exception:
        phys = None
    if not phys:
        phys = 64 << 20
    limit = int(phys * 85 // 100)      # what we let the compiler use
    budget = int(limit * 80 // 100)    # what the tile picker plans against (headroom)
    return budget, limit


def _pick_chunk_t(T):
    if T <= 128:
        return T
    for cand in (256, 128, 64, 32):
        if T % cand == 0:
            return cand
    return T  # ragged long T: single chunk (see TODO at top)


def _pick_block_b(B, T, H, chunk_t, vmem_budget_bytes):
    """Largest multiple-of-16 divisor of B whose resident set fits the budget,
    preferring >=2 grid steps (megacore / two v7x TensorCores)."""
    per_row = (
        2 * T * H * 2            # bf16 encoder tile, double-buffered
        + 3 * chunk_t * H * 4    # f32 proj + energy (+ broadcast temp) per chunk
        + 4 * H                  # bf16 dec tile (double-buffered)
        + 3 * T * 4              # scores scratch + double-buffered f32 out tile
    )
    fixed = 8 * H * H + 4 * H * 4          # (H,H) bf16 weights (worst case 2 bufs) + bias/v
    cap = max(1, (vmem_budget_bytes - fixed) // max(per_row, 1))

    candidates = [c for c in (512, 256, 128, 64, 32, 16) if c <= cap and B % c == 0]
    for cand in candidates:                 # descending: biggest tile with >=2 grid steps
        if B // cand >= 2:
            return cand
    if candidates:
        return candidates[0]
    return B                                # tiny/odd batches: one block spanning B


# --------------------------------------------------------------------------- #
# pallas_call wrapper
# --------------------------------------------------------------------------- #
@functools.partial(
    jax.jit,
    static_argnames=("h_pad", "block_b", "chunk_t", "vmem_limit_bytes",
                     "single_buffer_consts"))
def _attn_impl(decoder_hidden, encoder_outputs, weight, bias, v, *,
               h_pad, block_b, chunk_t, vmem_limit_bytes, single_buffer_consts):
    T, B, H = encoder_outputs.shape
    pad = h_pad - H

    # Split Linear(2H -> H): concat([dec, enc]) @ W.T == dec @ Wd + enc @ We
    wd = weight[:, :H].T                                    # (H, H) applied to decoder
    we = weight[:, H:].T                                    # (H, H) applied to encoder
    bias2d = bias.reshape(1, H).astype(jnp.float32)
    v2d = v.reshape(1, H).astype(jnp.float32)
    dec = decoder_hidden
    enc = encoder_outputs

    if pad:  # zero-pad feature dim to a multiple of 128 (values are unaffected)
        wd = jnp.pad(wd, ((0, pad), (0, pad)))
        we = jnp.pad(we, ((0, pad), (0, pad)))
        bias2d = jnp.pad(bias2d, ((0, 0), (0, pad)))
        v2d = jnp.pad(v2d, ((0, 0), (0, pad)))
        dec = jnp.pad(dec, ((0, 0), (0, pad)))
        enc = jnp.pad(enc, ((0, 0), (0, 0), (0, pad)))
    Hp = h_pad

    # bf16 streams into the kernel: halves the dominant HBM DMA (f32 MXU accumulate).
    wd = wd.astype(jnp.bfloat16)
    we = we.astype(jnp.bfloat16)
    dec = dec.astype(jnp.bfloat16)
    enc = enc.astype(jnp.bfloat16)

    const_kwargs = {}
    if single_buffer_consts:
        # Grid-invariant operands: no need for double buffers (reclaims 4*H^2 bytes).
        const_kwargs = dict(pipeline_mode=pl.Buffered(1))

    flops = 2 * B * T * Hp * Hp + 2 * B * Hp * Hp + 6 * B * T * Hp
    bytes_accessed = (T * B * Hp * 2 + B * Hp * 2 + 2 * Hp * Hp * 2
                      + 2 * Hp * 4 + B * T * 4)
    cost = pl.CostEstimate(flops=flops,
                           transcendentals=B * T * Hp + B * T,
                           bytes_accessed=bytes_accessed)

    kernel = functools.partial(attn_kernel, chunk_t=chunk_t)

    scores = pl.pallas_call(
        kernel,
        out_shape=jax.ShapeDtypeStruct((B, T), jnp.float32),
        grid_spec=pltpu.PrefetchScalarGridSpec(
            num_scalar_prefetch=0,
            grid=(B // block_b,),
            in_specs=[
                pl.BlockSpec((block_b, Hp), lambda b: (b, 0)),          # decoder hidden
                pl.BlockSpec((T, block_b, Hp), lambda b: (0, b, 0)),    # encoder (T,B,H)
                pl.BlockSpec((Hp, Hp), lambda b: (0, 0), **const_kwargs),  # Wd (resident)
                pl.BlockSpec((Hp, Hp), lambda b: (0, 0), **const_kwargs),  # We (resident)
                pl.BlockSpec((1, Hp), lambda b: (0, 0), **const_kwargs),   # bias
                pl.BlockSpec((1, Hp), lambda b: (0, 0), **const_kwargs),   # v
            ],
            out_specs=pl.BlockSpec((block_b, T), lambda b: (b, 0)),     # lane-dense (bB,T)
            scratch_shapes=[pltpu.VMEM((T, block_b), jnp.float32)],     # per-tile scores
        ),
        compiler_params=pltpu.CompilerParams(
            dimension_semantics=("parallel",),
            vmem_limit_bytes=vmem_limit_bytes),
        cost_estimate=cost,
    )(dec, enc, wd, we, bias2d, v2d)
    return scores


def attn_forward(decoder_hidden, encoder_outputs, weight, bias, v, *, block_b=None):
    """decoder_hidden:(B,H); encoder_outputs:(T,B,H); weight:(H,2H); bias:(H,); v:(H,).
    Returns (B, 1, T) normalized attention weights (matches the PyTorch module)."""
    T, B, H = encoder_outputs.shape
    h_pad = H if (H < 128 or H % 128 == 0) else ((H + 127) // 128) * 128
    chunk_t = _pick_chunk_t(T)
    budget, limit = _vmem_budget_and_limit()
    if block_b is None:
        block_b = _pick_block_b(B, T, h_pad, chunk_t, budget)
    assert B % block_b == 0, "block_b must divide B"

    kwargs = dict(h_pad=h_pad, block_b=block_b, chunk_t=chunk_t,
                  vmem_limit_bytes=limit)
    try:
        scores = _attn_impl(decoder_hidden, encoder_outputs, weight, bias, v,
                            single_buffer_consts=True, **kwargs)
        scores = jax.block_until_ready(scores)
    except Exception:
        # pipeline_mode=pl.Buffered(1) not supported on this jax/TPU combo:
        # fall back to default double-buffered constant operands.
        scores = _attn_impl(decoder_hidden, encoder_outputs, weight, bias, v,
                            single_buffer_consts=False, **kwargs)
    return scores[:, None, :]   # (B, 1, T) — free metadata reshape outside the kernel


# --------------------------------------------------------------------------- #
# Pure-JAX reference
# --------------------------------------------------------------------------- #
def attn_reference(decoder_hidden, encoder_outputs, weight, bias, v):
    """Pure-JAX f32 reference mirroring the PyTorch module."""
    T, B, H = encoder_outputs.shape
    Hrep = jnp.broadcast_to(decoder_hidden[None], (T, B, H)).transpose(1, 0, 2)  # (B,T,H)
    enc = encoder_outputs.transpose(1, 0, 2)                                     # (B,T,H)
    cat = jnp.concatenate([Hrep, enc], axis=2)                                   # (B,T,2H)
    energy = jnp.tanh(cat @ weight.T + bias)                                     # (B,T,H)
    scores = jnp.einsum("bth,h->bt", energy, v)                                  # (B,T)
    return jax.nn.softmax(scores, axis=1)[:, None, :]                            # (B,1,T)


# --------------------------------------------------------------------------- #
# Demo / correctness check
# --------------------------------------------------------------------------- #
if __name__ == "__main__":
    def run_case(B, T, H, forced_block_b=None):
        key = jax.random.PRNGKey(0)
        k_dec, k_enc, k_w, k_b, k_v = jax.random.split(key, 5)

        # Parameter init mirroring the PyTorch module's __init__ shapes/distributions.
        stdv_lin = 1.0 / math.sqrt(2 * H)
        weight = jax.random.uniform(k_w, (H, 2 * H), jnp.float32,
                                    minval=-stdv_lin, maxval=stdv_lin)  # Linear(2H,H).weight
        bias = jax.random.uniform(k_b, (H,), jnp.float32,
                                  minval=-stdv_lin, maxval=stdv_lin)    # Linear bias
        v = jax.random.normal(k_v, (H,), jnp.float32) * (1.0 / math.sqrt(H))  # self.v

        decoder_hidden = jax.random.normal(k_dec, (B, H), jnp.float32)
        encoder_outputs = jax.random.normal(k_enc, (T, B, H), jnp.float32)

        ref = attn_reference(decoder_hidden, encoder_outputs, weight, bias, v)
        out = jax.block_until_ready(
            attn_forward(decoder_hidden, encoder_outputs, weight, bias, v,
                         block_b=forced_block_b))
        assert out.shape == (B, 1, T)
        # bf16 matmul inputs (f32 accumulation) -> loosened tolerance vs f32 reference
        np.testing.assert_allclose(np.asarray(out), np.asarray(ref),
                                   rtol=2e-2, atol=2e-2)

    run_case(32, 8, 32)                      # auto tile -> block_b=16, 2-step grid
    run_case(32, 8, 32, forced_block_b=32)   # single block spanning the full batch
    run_case(32, 8, 160)                     # exercises H zero-padding (160 -> 256)

    print("KERNEL_OK")
</pallas_src>

<mosaic_0001>
module attributes {stable_mosaic.version = 11 : i64} {
  func.func @attn_kernel(%arg0: i32, %arg1: memref<16x32xbf16, #tpu.memory_space<vmem>>, %arg2: memref<8x16x32xbf16, #tpu.memory_space<vmem>>, %arg3: memref<32x32xbf16, #tpu.memory_space<vmem>>, %arg4: memref<32x32xbf16, #tpu.memory_space<vmem>>, %arg5: memref<1x32xf32, #tpu.memory_space<vmem>>, %arg6: memref<1x32xf32, #tpu.memory_space<vmem>>, %arg7: memref<16x8xf32, #tpu.memory_space<vmem>>, %arg8: memref<8x16xf32, #tpu.memory_space<vmem>>) attributes {dimension_semantics = [#tpu.dimension_semantics<parallel>], iteration_bounds = array<i64: 2>, scalar_prefetch = 0 : i64, scratch_operands = 1 : i64, tpu.core_type = #tpu.core_type<tc>, window_params = [{transform_indices = @transform_0, window_bounds = array<i64: 16, 32>}, {transform_indices = @transform_1, window_bounds = array<i64: 8, 16, 32>}, {pipeline_mode = #tpu.pipeline_mode<synchronous>, transform_indices = @transform_2, window_bounds = array<i64: 32, 32>}, {pipeline_mode = #tpu.pipeline_mode<synchronous>, transform_indices = @transform_3, window_bounds = array<i64: 32, 32>}, {pipeline_mode = #tpu.pipeline_mode<synchronous>, transform_indices = @transform_4, window_bounds = array<i64: 1, 32>}, {pipeline_mode = #tpu.pipeline_mode<synchronous>, transform_indices = @transform_5, window_bounds = array<i64: 1, 32>}, {transform_indices = @transform_6, window_bounds = array<i64: 16, 8>}]} {
    %c0 = arith.constant 0 : index
    %c0_0 = arith.constant 0 : index
    %0 = vector.load %arg1[%c0, %c0_0] : memref<16x32xbf16, #tpu.memory_space<vmem>>, vector<16x32xbf16>
    %c0_1 = arith.constant 0 : index
    %c0_2 = arith.constant 0 : index
    %1 = vector.load %arg3[%c0_1, %c0_2] : memref<32x32xbf16, #tpu.memory_space<vmem>>, vector<32x32xbf16>
    %cst = arith.constant dense<0.000000e+00> : vector<16x32xf32>
    %2 = tpu.matmul %0, %1, %cst {dimension_numbers = #tpu.dot_dimension_numbers<[1], [0], [0], [1], [0, 0, 1, 1], [], []>} : vector<16x32xbf16>, vector<32x32xbf16>, vector<16x32xf32> -> vector<16x32xf32>
    %c0_3 = arith.constant 0 : index
    %c0_4 = arith.constant 0 : index
    %3 = vector.load %arg5[%c0_3, %c0_4] : memref<1x32xf32, #tpu.memory_space<vmem>>, vector<1x32xf32>
    %4 = vector.broadcast %3 : vector<1x32xf32> to vector<16x32xf32>
    %5 = arith.addf %2, %4 : vector<16x32xf32>
    %c0_5 = arith.constant 0 : index
    %c0_6 = arith.constant 0 : index
    %6 = vector.load %arg6[%c0_5, %c0_6] : memref<1x32xf32, #tpu.memory_space<vmem>>, vector<1x32xf32>
    %c0_7 = arith.constant 0 : index
    %c0_8 = arith.constant 0 : index
    %c0_9 = arith.constant 0 : index
    %7 = vector.load %arg2[%c0_7, %c0_8, %c0_9] : memref<8x16x32xbf16, #tpu.memory_space<vmem>>, vector<8x16x32xbf16>
    %8 = vector.shape_cast %7 : vector<8x16x32xbf16> to vector<128x32xbf16>
    %c0_10 = arith.constant 0 : index
    %c0_11 = arith.constant 0 : index
    %9 = vector.load %arg4[%c0_10, %c0_11] : memref<32x32xbf16, #tpu.memory_space<vmem>>, vector<32x32xbf16>
    %cst_12 = arith.constant dense<0.000000e+00> : vector<128x32xf32>
    %10 = tpu.matmul %8, %9, %cst_12 {dimension_numbers = #tpu.dot_dimension_numbers<[1], [0], [0], [1], [0, 0, 1, 1], [], []>} : vector<128x32xbf16>, vector<32x32xbf16>, vector<128x32xf32> -> vector<128x32xf32>
    %11 = vector.shape_cast %10 : vector<128x32xf32> to vector<8x16x32xf32>
    %12 = vector.shape_cast %5 : vector<16x32xf32> to vector<1x16x32xf32>
    %13 = vector.broadcast %12 : vector<1x16x32xf32> to vector<8x16x32xf32>
    %14 = arith.addf %11, %13 : vector<8x16x32xf32>
    %15 = math.tanh %14 : vector<8x16x32xf32>
    %16 = vector.shape_cast %6 : vector<1x32xf32> to vector<1x1x32xf32>
    %17 = vector.broadcast %16 : vector<1x1x32xf32> to vector<8x16x32xf32>
    %18 = arith.mulf %15, %17 : vector<8x16x32xf32>
    %cst_13 = arith.constant dense<0.000000e+00> : vector<8x16xf32>
    %19 = vector.multi_reduction <add>, %18, %cst_13 [2] : vector<8x16x32xf32> to vector<8x16xf32>
    %c0_14 = arith.constant 0 : index
    %c0_15 = arith.constant 0 : index
    %20 = vector.load %arg8[%c0_14, %c0_15] : memref<8x16xf32, #tpu.memory_space<vmem>>, vector<8x16xf32>
    tpu.vector_store %arg8[%c0_14, %c0_15], %19 {strides = array<i32>} : memref<8x16xf32, #tpu.memory_space<vmem>>, vector<8x16xf32>,
    %c0_16 = arith.constant 0 : index
    %c0_17 = arith.constant 0 : index
    %21 = vector.load %arg8[%c0_16, %c0_17] : memref<8x16xf32, #tpu.memory_space<vmem>>, vector<8x16xf32>
    %22 = tpu.transpose %21, [1, 0] : vector<8x16xf32> -> vector<16x8xf32>
    %cst_18 = arith.constant dense<0xFF800000> : vector<16xf32>
    %23 = vector.multi_reduction <maximumf>, %22, %cst_18 [1] : vector<16x8xf32> to vector<16xf32>
    %24 = vector.shape_cast %23 : vector<16xf32> to vector<16x1xf32>
    %25 = vector.broadcast %24 : vector<16x1xf32> to vector<16x8xf32>
    %26 = arith.subf %22, %25 : vector<16x8xf32>
    %27 = math.exp %26 : vector<16x8xf32>
    %cst_19 = arith.constant dense<0.000000e+00> : vector<16xf32>
    %28 = vector.multi_reduction <add>, %27, %cst_19 [1] : vector<16x8xf32> to vector<16xf32>
    %29 = vector.shape_cast %28 : vector<16xf32> to vector<16x1xf32>
    %30 = vector.broadcast %29 : vector<16x1xf32> to vector<16x8xf32>
    %31 = arith.divf %27, %30 : vector<16x8xf32>
    %c0_20 = arith.constant 0 : index
    %c0_21 = arith.constant 0 : index
    %32 = vector.load %arg7[%c0_20, %c0_21] : memref<16x8xf32, #tpu.memory_space<vmem>>, vector<16x8xf32>
    tpu.vector_store %arg7[%c0_20, %c0_21], %31 {strides = array<i32>} : memref<16x8xf32, #tpu.memory_space<vmem>>, vector<16x8xf32>,
    return
  }
  func.func @transform_0(%arg0: i32) -> (i32, i32) {
    %c0_i32 = arith.constant 0 : i32
    %c0_i32_0 = arith.constant 0 : i32
    return %arg0, %c0_i32 : i32, i32
  }
  func.func @transform_1(%arg0: i32) -> (i32, i32, i32) {
    %c0_i32 = arith.constant 0 : i32
    %c0_i32_0 = arith.constant 0 : i32
    %c0_i32_1 = arith.constant 0 : i32
    return %c0_i32, %arg0, %c0_i32_0 : i32, i32, i32
  }
  func.func @transform_2(%arg0: i32) -> (i32, i32) {
    %c0_i32 = arith.constant 0 : i32
    %c0_i32_0 = arith.constant 0 : i32
    %c0_i32_1 = arith.constant 0 : i32
    return %c0_i32, %c0_i32_0 : i32, i32
  }
  func.func @transform_3(%arg0: i32) -> (i32, i32) {
    %c0_i32 = arith.constant 0 : i32
    %c0_i32_0 = arith.constant 0 : i32
    %c0_i32_1 = arith.constant 0 : i32
    return %c0_i32, %c0_i32_0 : i32, i32
  }
  func.func @transform_4(%arg0: i32) -> (i32, i32) {
    %c0_i32 = arith.constant 0 : i32
    %c0_i32_0 = arith.constant 0 : i32
    %c0_i32_1 = arith.constant 0 : i32
    return %c0_i32, %c0_i32_0 : i32, i32
  }
  func.func @transform_5(%arg0: i32) -> (i32, i32) {
    %c0_i32 = arith.constant 0 : i32
    %c0_i32_0 = arith.constant 0 : i32
    %c0_i32_1 = arith.constant 0 : i32
    return %c0_i32, %c0_i32_0 : i32, i32
  }
  func.func @transform_6(%arg0: i32) -> (i32, i32) {
    %c0_i32 = arith.constant 0 : i32
    %c0_i32_0 = arith.constant 0 : i32
    return %arg0, %c0_i32 : i32, i32
  }
}

module attributes {stable_mosaic.version = 11 : i64} {
  func.func @attn_kernel(%arg0: i32, %arg1: memref<16x32xbf16, #tpu.memory_space<vmem>>, %arg2: memref<8x16x32xbf16, #tpu.memory_space<vmem>>, %arg3: memref<32x32xbf16, #tpu.memory_space<vmem>>, %arg4: memref<32x32xbf16, #tpu.memory_space<vmem>>, %arg5: memref<1x32xf32, #tpu.memory_space<vmem>>, %arg6: memref<1x32xf32, #tpu.memory_space<vmem>>, %arg7: memref<16x8xf32, #tpu.memory_space<vmem>>, %arg8: memref<8x16xf32, #tpu.memory_space<vmem>>) attributes {dimension_semantics = [#tpu.dimension_semantics<parallel>], iteration_bounds = array<i64: 2>, scalar_prefetch = 0 : i64, scratch_operands = 1 : i64, tpu.core_type = #tpu.core_type<tc>, window_params = [{transform_indices = @transform_0, window_bounds = array<i64: 16, 32>}, {transform_indices = @transform_1, window_bounds = array<i64: 8, 16, 32>}, {pipeline_mode = #tpu.pipeline_mode<synchronous>, transform_indices = @transform_2, window_bounds = array<i64: 32, 32>}, {pipeline_mode = #tpu.pipeline_mode<synchronous>, transform_indices = @transform_3, window_bounds = array<i64: 32, 32>}, {pipeline_mode = #tpu.pipeline_mode<synchronous>, transform_indices = @transform_4, window_bounds = array<i64: 1, 32>}, {pipeline_mode = #tpu.pipeline_mode<synchronous>, transform_indices = @transform_5, window_bounds = array<i64: 1, 32>}, {transform_indices = @transform_6, window_bounds = array<i64: 16, 8>}]} {
    %c0 = arith.constant 0 : index
    %c0_0 = arith.constant 0 : index
    %0 = vector.load %arg1[%c0, %c0_0] : memref<16x32xbf16, #tpu.memory_space<vmem>>, vector<16x32xbf16>
    %c0_1 = arith.constant 0 : index
    %c0_2 = arith.constant 0 : index
    %1 = vector.load %arg3[%c0_1, %c0_2] : memref<32x32xbf16, #tpu.memory_space<vmem>>, vector<32x32xbf16>
    %cst = arith.constant dense<0.000000e+00> : vector<16x32xf32>
    %2 = tpu.matmul %0, %1, %cst {dimension_numbers = #tpu.dot_dimension_numbers<[1], [0], [0], [1], [0, 0, 1, 1], [], []>} : vector<16x32xbf16>, vector<32x32xbf16>, vector<16x32xf32> -> vector<16x32xf32>
    %c0_3 = arith.constant 0 : index
    %c0_4 = arith.constant 0 : index
    %3 = vector.load %arg5[%c0_3, %c0_4] : memref<1x32xf32, #tpu.memory_space<vmem>>, vector<1x32xf32>
    %4 = vector.broadcast %3 : vector<1x32xf32> to vector<16x32xf32>
    %5 = arith.addf %2, %4 : vector<16x32xf32>
    %c0_5 = arith.constant 0 : index
    %c0_6 = arith.constant 0 : index
    %6 = vector.load %arg6[%c0_5, %c0_6] : memref<1x32xf32, #tpu.memory_space<vmem>>, vector<1x32xf32>
    %c0_7 = arith.constant 0 : index
    %c0_8 = arith.constant 0 : index
    %c0_9 = arith.constant 0 : index
    %7 = vector.load %arg2[%c0_7, %c0_8, %c0_9] : memref<8x16x32xbf16, #tpu.memory_space<vmem>>, vector<8x16x32xbf16>
    %8 = vector.shape_cast %7 : vector<8x16x32xbf16> to vector<128x32xbf16>
    %c0_10 = arith.constant 0 : index
    %c0_11 = arith.constant 0 : index
    %9 = vector.load %arg4[%c0_10, %c0_11] : memref<32x32xbf16, #tpu.memory_space<vmem>>, vector<32x32xbf16>
    %cst_12 = arith.constant dense<0.000000e+00> : vector<128x32xf32>
    %10 = tpu.matmul %8, %9, %cst_12 {dimension_numbers = #tpu.dot_dimension_numbers<[1], [0], [0], [1], [0, 0, 1, 1], [], []>} : vector<128x32xbf16>, vector<32x32xbf16>, vector<128x32xf32> -> vector<128x32xf32>
    %11 = vector.shape_cast %10 : vector<128x32xf32> to vector<8x16x32xf32>
    %12 = vector.shape_cast %5 : vector<16x32xf32> to vector<1x16x32xf32>
    %13 = vector.broadcast %12 : vector<1x16x32xf32> to vector<8x16x32xf32>
    %14 = arith.addf %11, %13 : vector<8x16x32xf32>
    %15 = math.tanh %14 : vector<8x16x32xf32>
    %16 = vector.shape_cast %6 : vector<1x32xf32> to vector<1x1x32xf32>
    %17 = vector.broadcast %16 : vector<1x1x32xf32> to vector<8x16x32xf32>
    %18 = arith.mulf %15, %17 : vector<8x16x32xf32>
    %cst_13 = arith.constant dense<0.000000e+00> : vector<8x16xf32>
    %19 = vector.multi_reduction <add>, %18, %cst_13 [2] : vector<8x16x32xf32> to vector<8x16xf32>
    %c0_14 = arith.constant 0 : index
    %c0_15 = arith.constant 0 : index
    %20 = vector.load %arg8[%c0_14, %c0_15] : memref<8x16xf32, #tpu.memory_space<vmem>>, vector<8x16xf32>
    tpu.vector_store %arg8[%c0_14, %c0_15], %19 {strides = array<i32>} : memref<8x16xf32, #tpu.memory_space<vmem>>, vector<8x16xf32>,
    %c0_16 = arith.constant 0 : index
    %c0_17 = arith.constant 0 : index
    %21 = vector.load %arg8[%c0_16, %c0_17] : memref<8x16xf32, #tpu.memory_space<vmem>>, vector<8x16xf32>
    %22 = tpu.transpose %21, [1, 0] : vector<8x16xf32> -> vector<16x8xf32>
    %cst_18 = arith.constant dense<0xFF800000> : vector<16xf32>
    %23 = vector.multi_reduction <maximumf>, %22, %cst_18 [1] : vector<16x8xf32> to vector<16xf32>
    %24 = vector.shape_cast %23 : vector<16xf32> to vector<16x1xf32>
    %25 = vector.broadcast %24 : vector<16x1xf32> to vector<16x8xf32>
    %26 = arith.subf %22, %25 : vector<16x8xf32>
    %27 = math.exp %26 : vector<16x8xf32>
    %cst_19 = arith.constant dense<0.000000e+00> : vector<16xf32>
    %28 = vector.multi_reduction <add>, %27, %cst_19 [1] : vector<16x8xf32> to vector<16xf32>
    %29 = vector.shape_cast %28 : vector<16xf32> to vector<16x1xf32>
    %30 = vector.broadcast %29 : vector<16x1xf32> to vector<16x8xf32>
    %31 = arith.divf %27, %30 : vector<16x8xf32>
    %c0_20 = arith.constant 0 : index
    %c0_21 = arith.constant 0 : index
    %32 = vector.load %arg7[%c0_20, %c0_21] : memref<16x8xf32, #tpu.memory_space<vmem>>, vector<16x8xf32>
    tpu.vector_store %arg7[%c0_20, %c0_21], %31 {strides = array<i32>} : memref<16x8xf32, #tpu.memory_space<vmem>>, vector<16x8xf32>,
    return
  }
  func.func @transform_0(%arg0: i32) -> (i32, i32) {
    %c0_i32 = arith.constant 0 : i32
    %c0_i32_0 = arith.constant 0 : i32
    return %arg0, %c0_i32 : i32, i32
  }
  func.func @transform_1(%arg0: i32) -> (i32, i32, i32) {
    %c0_i32 = arith.constant 0 : i32
    %c0_i32_0 = arith.constant 0 : i32
    %c0_i32_1 = arith.constant 0 : i32
    return %c0_i32, %arg0, %c0_i32_0 : i32, i32, i32
  }
  func.func @transform_2(%arg0: i32) -> (i32, i32) {
    %c0_i32 = arith.constant 0 : i32
    %c0_i32_0 = arith.constant 0 : i32
    %c0_i32_1 = arith.constant 0 : i32
    return %c0_i32, %c0_i32_0 : i32, i32
  }
  func.func @transform_3(%arg0: i32) -> (i32, i32) {
    %c0_i32 = arith.constant 0 : i32
    %c0_i32_0 = arith.constant 0 : i32
    %c0_i32_1 = arith.constant 0 : i32
    return %c0_i32, %c0_i32_0 : i32, i32
  }
  func.func @transform_4(%arg0: i32) -> (i32, i32) {
    %c0_i32 = arith.constant 0 : i32
    %c0_i32_0 = arith.constant 0 : i32
    %c0_i32_1 = arith.constant 0 : i32
    return %c0_i32, %c0_i32_0 : i32, i32
  }
  func.func @transform_5(%arg0: i32) -> (i32, i32) {
    %c0_i32 = arith.constant 0 : i32
    %c0_i32_0 = arith.constant 0 : i32
    %c0_i32_1 = arith.constant 0 : i32
    return %c0_i32, %c0_i32_0 : i32, i32
  }
  func.func @transform_6(%arg0: i32) -> (i32, i32) {
    %c0_i32 = arith.constant 0 : i32
    %c0_i32_0 = arith.constant 0 : i32
    return %arg0, %c0_i32 : i32, i32
  }
}

</mosaic_0001>

<llo_original>
// kernel: _attn_impl.1
$region0: #{_attn_impl.1}
  #allocation0 [shape = 'u32[]', space=smem, size = 0x4, offset = 0x4, fixed_abs, tag = 'smem constant byte address 0x4 - core index']
  #allocation1 [shape = 'u32[144,128]{1,0:T(1,128)}', space=vmem, size = 0x12000, scoped, tag = 'internal scratch']
  #allocation2 [shape = 'f32[8,16]{1,0:T(8,128)}', space=vmem, size = 0x1000, scoped, tag = 'scratch operand']
  %s0 = inlined_call_operand.vmem [shape: bf16[32,32], index: 0, kind: input, shape index: {}]
  %s1 = inlined_call_operand.vmem [shape: bf16[8,32,32], index: 1, kind: input, shape index: {}]
  %s2 = inlined_call_operand.vmem [shape: bf16[32,32], index: 2, kind: input, shape index: {}]
  %s3 = inlined_call_operand.vmem [shape: bf16[32,32], index: 3, kind: input, shape index: {}]
  %s4 = inlined_call_operand.vmem [shape: f32[1,32], index: 4, kind: input, shape index: {}]
  %s5 = inlined_call_operand.vmem [shape: f32[1,32], index: 5, kind: input, shape index: {}]
  %s6 = inlined_call_operand.vmem [shape: f32[32,8], index: 6, kind: output, shape index: {}]
  %s7 = sld [smem:[#allocation0]]
  $region98: #{_attn_impl.1} parent=0
    _
  %s9 = ssub.s32 1, %s7
  %s10 = scalar_select 0, %s9, %s7
  $region1: #{_attn_impl.1} parent=0
    #allocation3 [shape = 'u8[65536]{0}', space=vmem, size = 0x10000, scoped, tag = 'input window, operand 1']
    loop: start=0, step=1, limit=4
    $region2: #{_attn_impl.1} parent=1 // loop_pre_header
      _
    $region3: #{_attn_impl.1} parent=1 // loop_header
      %s12 = sphi 0, %s16
      %p13 = scmp.ge.s32.totalorder %s12, 4
      %s22 = sphi 0, %s24
      %s25 = sphi 0, %s22
      %s26 = sphi 0, %s25
      %s42 = sphi 0, %s26
      %s48 = sphi 0, %s50
      %s51 = sphi 0, %s48
      %s52 = sphi 0, %s51
      %s68 = sphi 0, %s52
      %s72 = sphi 0, %s72
      %s74 = sphi 0, %s72
      %s75 = sphi 0, %s74
      %s89 = sphi 0, %s75
      %s93 = sphi 0, %s93
      %s95 = sphi 0, %s93
      %s96 = sphi 0, %s95
      %s110 = sphi 0, %s96
      %s114 = sphi 0, %s114
      %s116 = sphi 0, %s114
      %s117 = sphi 0, %s116
      %s131 = sphi 0, %s117
      %s135 = sphi 0, %s135
      %s137 = sphi 0, %s135
      %s138 = sphi 0, %s137
      %s152 = sphi 0, %s138
      %s158 = sphi 0, %s160
      %s161 = sphi 0, %s158
      %s162 = sphi 0, %s161
      %s178 = sphi 0, %s162
    $region4: #{_attn_impl.1} parent=1 // loop_header_branch
      %15 = sbr.rel (%p13) target = $region8
    $region5: #{_attn_impl.1} parent=1 // loop_body
      %s17 = ssub.s32 %s12, 1
      %s18 = ssub.s32 %s12, 2
      %s19 = sadd.s32 %s12, 1
      %s20 = ssub.s32 %s12, %s19
      %p21 = scmp.eq.s32.totalorder %s20, 0
      %s23 = sadd.s32 %s22, 1
      %s24 = scalar_select %p21, %s22, %s23
      %p27 = pneg %p21
      %p28 = scmp.eq.s32.totalorder %s12, 1
      %p29 = por %p27, %p28
      %p30 = scmp.ne.s32.totalorder %s22, %s25
      %p31 = scmp.eq.s32.totalorder %s12, 0
      %p32 = por %p30, %p31
      %p33 = scmp.ne.s32.totalorder %s22, %s25
      %p34 = scmp.eq.s32.totalorder %s17, 1
      %p35 = por %p33, %p34
      %p36 = scmp.ne.s32.totalorder %s25, %s26
      %p37 = scmp.eq.s32.totalorder %s17, 0
      %p38 = por %p36, %p37
      %p39 = scmp.ne.s32.totalorder %s25, %s26
      %p40 = scmp.eq.s32.totalorder %s18, 1
      %p41 = por %p39, %p40
      %p43 = scmp.ne.s32.totalorder %s26, %s42
      %p44 = scmp.eq.s32.totalorder %s18, 0
      %p45 = por %p43, %p44
      %s46 = ssub.s32 %s12, %s19
      %p47 = scmp.eq.s32.totalorder %s46, 0
      %s49 = sadd.s32 %s48, 1
      %s50 = scalar_select %p47, %s48, %s49
      %p53 = pneg %p47
      %p54 = scmp.eq.s32.totalorder %s12, 1
      %p55 = por %p53, %p54
      %p56 = scmp.ne.s32.totalorder %s48, %s51
      %p57 = scmp.eq.s32.totalorder %s12, 0
      %p58 = por %p56, %p57
      %p59 = scmp.ne.s32.totalorder %s48, %s51
      %p60 = scmp.eq.s32.totalorder %s17, 1
      %p61 = por %p59, %p60
      %p62 = scmp.ne.s32.totalorder %s51, %s52
      %p63 = scmp.eq.s32.totalorder %s17, 0
      %p64 = por %p62, %p63
      %p65 = scmp.ne.s32.totalorder %s51, %s52
      %p66 = scmp.eq.s32.totalorder %s18, 1
      %p67 = por %p65, %p66
      %p69 = scmp.ne.s32.totalorder %s52, %s68
      %p70 = scmp.eq.s32.totalorder %s18, 0
      %p71 = por %p69, %p70
      %s73 = sadd.s32 %s72, 1
      %p76 = scmp.eq.s32.totalorder %s12, 1
      %p77 = scmp.ne.s32.totalorder %s72, %s74
      %p78 = scmp.eq.s32.totalorder %s12, 0
      %p79 = por %p77, %p78
      %p80 = scmp.ne.s32.totalorder %s72, %s74
      %p81 = scmp.eq.s32.totalorder %s17, 1
      %p82 = por %p80, %p81
      %p83 = scmp.ne.s32.totalorder %s74, %s75
      %p84 = scmp.eq.s32.totalorder %s17, 0
      %p85 = por %p83, %p84
      %p86 = scmp.ne.s32.totalorder %s74, %s75
      %p87 = scmp.eq.s32.totalorder %s18, 1
      %p88 = por %p86, %p87
      %p90 = scmp.ne.s32.totalorder %s75, %s89
      %p91 = scmp.eq.s32.totalorder %s18, 0
      %p92 = por %p90, %p91
      %s94 = sadd.s32 %s93, 1
      %p97 = scmp.eq.s32.totalorder %s12, 1
      %p98 = scmp.ne.s32.totalorder %s93, %s95
      %p99 = scmp.eq.s32.totalorder %s12, 0
      %p100 = por %p98, %p99
      %p101 = scmp.ne.s32.totalorder %s93, %s95
      %p102 = scmp.eq.s32.totalorder %s17, 1
      %p103 = por %p101, %p102
      %p104 = scmp.ne.s32.totalorder %s95, %s96
      %p105 = scmp.eq.s32.totalorder %s17, 0
      %p106 = por %p104, %p105
      %p107 = scmp.ne.s32.totalorder %s95, %s96
      %p108 = scmp.eq.s32.totalorder %s18, 1
      %p109 = por %p107, %p108
      %p111 = scmp.ne.s32.totalorder %s96, %s110
      %p112 = scmp.eq.s32.totalorder %s18, 0
      %p113 = por %p111, %p112
      %s115 = sadd.s32 %s114, 1
      %p118 = scmp.eq.s32.totalorder %s12, 1
      %p119 = scmp.ne.s32.totalorder %s114, %s116
      %p120 = scmp.eq.s32.totalorder %s12, 0
      %p121 = por %p119, %p120
      %p122 = scmp.ne.s32.totalorder %s114, %s116
      %p123 = scmp.eq.s32.totalorder %s17, 1
      %p124 = por %p122, %p123
      %p125 = scmp.ne.s32.totalorder %s116, %s117
      %p126 = scmp.eq.s32.totalorder %s17, 0
      %p127 = por %p125, %p126
      %p128 = scmp.ne.s32.totalorder %s116, %s117
      %p129 = scmp.eq.s32.totalorder %s18, 1
      %p130 = por %p128, %p129
      %p132 = scmp.ne.s32.totalorder %s117, %s131
      %p133 = scmp.eq.s32.totalorder %s18, 0
      %p134 = por %p132, %p133
      %s136 = sadd.s32 %s135, 1
      %p139 = scmp.eq.s32.totalorder %s12, 1
      %p140 = scmp.ne.s32.totalorder %s135, %s137
      %p141 = scmp.eq.s32.totalorder %s12, 0
      %p142 = por %p140, %p141
      %p143 = scmp.ne.s32.totalorder %s135, %s137
      %p144 = scmp.eq.s32.totalorder %s17, 1
      %p145 = por %p143, %p144
      %p146 = scmp.ne.s32.totalorder %s137, %s138
      %p147 = scmp.eq.s32.totalorder %s17, 0
      %p148 = por %p146, %p147
      %p149 = scmp.ne.s32.totalorder %s137, %s138
      %p150 = scmp.eq.s32.totalorder %s18, 1
      %p151 = por %p149, %p150
      %p153 = scmp.ne.s32.totalorder %s138, %s152
      %p154 = scmp.eq.s32.totalorder %s18, 0
      %p155 = por %p153, %p154
      %s156 = ssub.s32 %s12, %s19
      %p157 = scmp.eq.s32.totalorder %s156, 0
      %s159 = sadd.s32 %s158, 1
      %s160 = scalar_select %p157, %s158, %s159
      %p163 = pneg %p157
      %p164 = scmp.eq.s32.totalorder %s12, 1
      %p165 = por %p163, %p164
      %p166 = scmp.ne.s32.totalorder %s158, %s161
      %p167 = scmp.eq.s32.totalorder %s12, 0
      %p168 = por %p166, %p167
      %p169 = scmp.ne.s32.totalorder %s158, %s161
      %p170 = scmp.eq.s32.totalorder %s17, 1
      %p171 = por %p169, %p170
      %p172 = scmp.ne.s32.totalorder %s161, %s162
      %p173 = scmp.eq.s32.totalorder %s17, 0
      %p174 = por %p172, %p173
      %p175 = scmp.ne.s32.totalorder %s161, %s162
      %p176 = scmp.eq.s32.totalorder %s18, 1
      %p177 = por %p175, %p176
      %p179 = scmp.ne.s32.totalorder %s162, %s178
      %p180 = scmp.eq.s32.totalorder %s18, 0
      %p181 = por %p179, %p180
      %p182 = scmp.le.s32.totalorder 1, %s12
      %p183 = scmp.lt.s32.totalorder %s12, 3
      %p184 = pnand %p182, %p183
      %p185 = pneg %p184
      // Predicated region
      $region9: #{_attn_impl.1} parent=5 // pred_check
        _
      $region10: #{_attn_impl.1} parent=5 // pred_check_branch
        %187 = sbr.rel (%p184) target = $region12
      $region11: #{_attn_impl.1} parent=5 // pred_region
        %s188 = ssub.s32 %s12, 1
        // Predicated region
        $region13: #{_attn_impl.1} parent=11 // pred_check
          %p189 = pneg %p85
        $region14: #{_attn_impl.1} parent=11 // pred_check_branch
          %191 = sbr.rel (%p189) target = $region16
        $region15: #{_attn_impl.1} parent=11 // pred_region
          _
        $region16: #{_attn_impl.1} parent=11 // pred_fallthru
          _
        // Predicated region
        $region17: #{_attn_impl.1} parent=11 // pred_check
          %p192 = pneg %p106
        $region18: #{_attn_impl.1} parent=11 // pred_check_branch
          %194 = sbr.rel (%p192) target = $region20
        $region19: #{_attn_impl.1} parent=11 // pred_region
          _
        $region20: #{_attn_impl.1} parent=11 // pred_fallthru
          _
        // Predicated region
        $region21: #{_attn_impl.1} parent=11 // pred_check
          %p195 = pneg %p127
        $region22: #{_attn_impl.1} parent=11 // pred_check_branch
          %197 = sbr.rel (%p195) target = $region24
        $region23: #{_attn_impl.1} parent=11 // pred_region
          _
        $region24: #{_attn_impl.1} parent=11 // pred_fallthru
          _
        // Predicated region
        $region25: #{_attn_impl.1} parent=11 // pred_check
          %p198 = pneg %p148
        $region26: #{_attn_impl.1} parent=11 // pred_check_branch
          %200 = sbr.rel (%p198) target = $region28
        $region27: #{_attn_impl.1} parent=11 // pred_region
          _
        $region28: #{_attn_impl.1} parent=11 // pred_fallthru
          _
      $region12: #{_attn_impl.1} parent=5 // pred_fallthru
        _
      %p201 = scmp.lt.s32.totalorder %s12, 2
      // Predicated region
      $region29: #{_attn_impl.1} parent=5 // pred_check
        %p202 = pneg %p201
      $region30: #{_attn_impl.1} parent=5 // pred_check_branch
        %204 = sbr.rel (%p202) target = $region32
      $region31: #{_attn_impl.1} parent=5 // pred_region
        // Predicated region
        $region33: #{_attn_impl.1} parent=31 // pred_check
          %p205 = pneg %p32
        $region34: #{_attn_impl.1} parent=31 // pred_check_branch
          %207 = sbr.rel (%p205) target = $region36
        $region35: #{_attn_impl.1} parent=31 // pred_region
          %s208 = smul.u32 2, %s12
          %p209 = scmp.lt.s32.totalorder %s208, 3
          %s210 = scalar_select %p209, %s208, 3
          %s211 = smul.addr %s210, 4
          %s212 = scalar_lea.vmem %s0, %s211
          %s213 = smul.u32 2, %s12
        $region36: #{_attn_impl.1} parent=31 // pred_fallthru
          _
        // Predicated region
        $region37: #{_attn_impl.1} parent=31 // pred_check
          %p214 = pneg %p58
        $region38: #{_attn_impl.1} parent=31 // pred_check_branch
          %216 = sbr.rel (%p214) target = $region40
        $region39: #{_attn_impl.1} parent=31 // pred_region
          %s217 = sand.u32 %s48, 1
          %s218 = sand.u32 %s48, 1
          %s219 = smul.addr %s218, 64
          %s220 = scalar_lea.vmem [#allocation3], %s219
          %s221 = smul.u32 2, %s12
          %s222 = smul.addr %s221, 4
          %s223 = scalar_lea.vmem %s1, %s222
          // Predicated region
          $region41: #{_attn_impl.1} parent=39 // pred_check
            _
          $region42: #{_attn_impl.1} parent=39 // pred_check_branch
            %225 = sbr.rel (0) target = $region44
          $region43: #{_attn_impl.1} parent=39 // pred_region
            // Predicated region
            $region45: #{_attn_impl.1} parent=43 // pred_check
              _
            $region46: #{_attn_impl.1} parent=43 // pred_check_branch
              %227 = sbr.rel target = $region48
            $region47: #{_attn_impl.1} parent=43 // pred_region
              // Predicated region
              $region60: #{_attn_impl.1} parent=47 // pred_check
                _
              $region61: #{_attn_impl.1} parent=47 // pred_check_branch
                %273 = sbr.rel (0) target = $region63
              $region62: #{_attn_impl.1} parent=47 // pred_region
                loop: start=0, step=1, limit=1
                $region64: #{_attn_impl.1} parent=62 // loop_pre_header
                  _
                $region65: #{_attn_impl.1} parent=62 // loop_header
                  %s275 = sphi 0, %s279
                  %p276 = scmp.ge.s32.totalorder %s275, 1
                  %s280 = sphi %s223, %s223
                  %s281 = sphi %s220, %s220
                $region66: #{_attn_impl.1} parent=62 // loop_header_branch
                  %278 = sbr.rel (%p276) target = $region70
                $region67: #{_attn_impl.1} parent=62 // loop_body
                  _
                $region68: #{_attn_impl.1} parent=62 // loop_footer
                  %s279 = sadd.s32 1, %s275
                $region69: #{_attn_impl.1} parent=62 // loop_footer_branch
                  %274 = sbr.rel target = $region65
                $region70: #{_attn_impl.1} parent=62 // loop_exit
                  _
                %s283 = ssub.s32 16, 1
                loop: start=0, step=1, limit=1
                $region71: #{_attn_impl.1} parent=62 // loop_pre_header
                  _
                $region72: #{_attn_impl.1} parent=62 // loop_header
                  %s285 = sphi 0, %s289
                  %p286 = scmp.ge.s32.totalorder %s285, 1
                  %s290 = sphi %s223, %s223
                  %s291 = sphi %s220, %s220
                $region73: #{_attn_impl.1} parent=62 // loop_header_branch
                  %288 = sbr.rel (%p286) target = $region77
                $region74: #{_attn_impl.1} parent=62 // loop_body
                  %v292 = vld [vmem:[%s290] sm:%s283]
                  %293 = vst [vmem:[%s291] sm:%s283] %v292
                  %v294 = vld [vmem:[%s290 + $0x4] sm:%s283]
                  %295 = vst [vmem:[%s291 + $0x4] sm:%s283] %v294
                  %v296 = vld [vmem:[%s290 + $0x10] sm:%s283]
                  %297 = vst [vmem:[%s291 + $0x8] sm:%s283] %v296
                  %v298 = vld [vmem:[%s290 + $0x14] sm:%s283]
                  %299 = vst [vmem:[%s291 + $0xc] sm:%s283] %v298
                  %v300 = vld [vmem:[%s290 + $0x20] sm:%s283]
                  %301 = vst [vmem:[%s291 + $0x10] sm:%s283] %v300
                  %v302 = vld [vmem:[%s290 + $0x24] sm:%s283]
                  %303 = vst [vmem:[%s291 + $0x14] sm:%s283] %v302
                  %v304 = vld [vmem:[%s290 + $0x30] sm:%s283]
                  %305 = vst [vmem:[%s291 + $0x18] sm:%s283] %v304
                  %v306 = vld [vmem:[%s290 + $0x34] sm:%s283]
                  %307 = vst [vmem:[%s291 + $0x1c] sm:%s283] %v306
                  %v308 = vld [vmem:[%s290 + $0x40] sm:%s283]
                  %309 = vst [vmem:[%s291 + $0x20] sm:%s283] %v308
                  %v310 = vld [vmem:[%s290 + $0x44] sm:%s283]
                  %311 = vst [vmem:[%s291 + $0x24] sm:%s283] %v310
                  %v312 = vld [vmem:[%s290 + $0x50] sm:%s283]
                  %313 = vst [vmem:[%s291 + $0x28] sm:%s283] %v312
                  %v314 = vld [vmem:[%s290 + $0x54] sm:%s283]
                  %315 = vst [vmem:[%s291 + $0x2c] sm:%s283] %v314
                  %v316 = vld [vmem:[%s290 + $0x60] sm:%s283]
                  %317 = vst [vmem:[%s291 + $0x30] sm:%s283] %v316
                  %v318 = vld [vmem:[%s290 + $0x64] sm:%s283]
                  %319 = vst [vmem:[%s291 + $0x34] sm:%s283] %v318
                  %v320 = vld [vmem:[%s290 + $0x70] sm:%s283]
                  %321 = vst [vmem:[%s291 + $0x38] sm:%s283] %v320
                  %v322 = vld [vmem:[%s290 + $0x74] sm:%s283]
                  %323 = vst [vmem:[%s291 + $0x3c] sm:%s283] %v322
                $region75: #{_attn_impl.1} parent=62 // loop_footer
                  %s289 = sadd.s32 1, %s285
                $region76: #{_attn_impl.1} parent=62 // loop_footer_branch
                  %284 = sbr.rel target = $region72
                $region77: #{_attn_impl.1} parent=62 // loop_exit
                  _
              $region63: #{_attn_impl.1} parent=47 // pred_fallthru
                _
            $region48: #{_attn_impl.1} parent=43 // pred_fallthru
              _
            // Predicated region
            $region49: #{_attn_impl.1} parent=43 // pred_check
              _
            $region50: #{_attn_impl.1} parent=43 // pred_check_branch
              %229 = sbr.rel (0) target = $region52
            $region51: #{_attn_impl.1} parent=43 // pred_region
              %s231 = ssub.s32 16, 1
              loop: start=0, step=1, limit=1
              $region53: #{_attn_impl.1} parent=51 // loop_pre_header
                _
              $region54: #{_attn_impl.1} parent=51 // loop_header
                %s233 = sphi 0, %s237
                %p234 = scmp.ge.s32.totalorder %s233, 1
                %s238 = sphi %s223, %s223
                %s239 = sphi %s220, %s220
              $region55: #{_attn_impl.1} parent=51 // loop_header_branch
                %236 = sbr.rel (%p234) target = $region59
              $region56: #{_attn_impl.1} parent=51 // loop_body
                %v240 = vld [vmem:[%s238] sm:%s231]
                %241 = vst [vmem:[%s239] sm:%s231] %v240
                %v242 = vld [vmem:[%s238 + $0x4] sm:%s231]
                %243 = vst [vmem:[%s239 + $0x4] sm:%s231] %v242
                %v244 = vld [vmem:[%s238 + $0x10] sm:%s231]
                %245 = vst [vmem:[%s239 + $0x8] sm:%s231] %v244
                %v246 = vld [vmem:[%s238 + $0x14] sm:%s231]
                %247 = vst [vmem:[%s239 + $0xc] sm:%s231] %v246
                %v248 = vld [vmem:[%s238 + $0x20] sm:%s231]
                %249 = vst [vmem:[%s239 + $0x10] sm:%s231] %v248
                %v250 = vld [vmem:[%s238 + $0x24] sm:%s231]
                %251 = vst [vmem:[%s239 + $0x14] sm:%s231] %v250
                %v252 = vld [vmem:[%s238 + $0x30] sm:%s231]
                %253 = vst [vmem:[%s239 + $0x18] sm:%s231] %v252
                %v254 = vld [vmem:[%s238 + $0x34] sm:%s231]
                %255 = vst [vmem:[%s239 + $0x1c] sm:%s231] %v254
                %v256 = vld [vmem:[%s238 + $0x40] sm:%s231]
                %257 = vst [vmem:[%s239 + $0x20] sm:%s231] %v256
                %v258 = vld [vmem:[%s238 + $0x44] sm:%s231]
                %259 = vst [vmem:[%s239 + $0x24] sm:%s231] %v258
                %v260 = vld [vmem:[%s238 + $0x50] sm:%s231]
                %261 = vst [vmem:[%s239 + $0x28] sm:%s231] %v260
                %v262 = vld [vmem:[%s238 + $0x54] sm:%s231]
                %263 = vst [vmem:[%s239 + $0x2c] sm:%s231] %v262
                %v264 = vld [vmem:[%s238 + $0x60] sm:%s231]
                %265 = vst [vmem:[%s239 + $0x30] sm:%s231] %v264
                %v266 = vld [vmem:[%s238 + $0x64] sm:%s231]
                %267 = vst [vmem:[%s239 + $0x34] sm:%s231] %v266
                %v268 = vld [vmem:[%s238 + $0x70] sm:%s231]
                %269 = vst [vmem:[%s239 + $0x38] sm:%s231] %v268
                %v270 = vld [vmem:[%s238 + $0x74] sm:%s231]
                %271 = vst [vmem:[%s239 + $0x3c] sm:%s231] %v270
              $region57: #{_attn_impl.1} parent=51 // loop_footer
                %s237 = sadd.s32 1, %s233
              $region58: #{_attn_impl.1} parent=51 // loop_footer_branch
                %232 = sbr.rel target = $region54
              $region59: #{_attn_impl.1} parent=51 // loop_exit
                _
            $region52: #{_attn_impl.1} parent=43 // pred_fallthru
              _
          $region44: #{_attn_impl.1} parent=39 // pred_fallthru
            _
          %324 = vnop
        $region40: #{_attn_impl.1} parent=31 // pred_fallthru
          _
      $region32: #{_attn_impl.1} parent=5 // pred_fallthru
        _
      %p325 = scmp.le.s32.totalorder 1, %s12
      %p326 = scmp.lt.s32.totalorder %s12, 3
      %p327 = pnand %p325, %p326
      %p328 = pneg %p327
      // Predicated region
      $region78: #{_attn_impl.1} parent=5 // pred_check
        _
      $region79: #{_attn_impl.1} parent=5 // pred_check_branch
        %330 = sbr.rel (%p327) target = $region81
      $region80: #{_attn_impl.1} parent=5 // pred_region
        %s331 = ssub.s32 %s12, 1
        %s332 = sand.u32 %s51, 1
        %s333 = sand.u32 %s51, 1
        %s334 = smul.addr %s333, 64
        %s335 = scalar_lea.vmem [#allocation3], %s334
        // Predicated region
        $region82: #{_attn_impl.1} parent=80 // pred_check
          %p336 = pneg %p64
        $region83: #{_attn_impl.1} parent=80 // pred_check_branch
          %338 = sbr.rel (%p336) target = $region85
        $region84: #{_attn_impl.1} parent=80 // pred_region
          _
        $region85: #{_attn_impl.1} parent=80 // pred_fallthru
          _
        %s339 = smul.u32 2, %s17
        %p340 = scmp.lt.s32.totalorder %s339, 3
        %s341 = scalar_select %p340, %s339, 3
        %s342 = smul.addr %s341, 4
        %s343 = scalar_lea.vmem %s0, %s342
        %p344 = pneg %p38
        %p345 = pneg %p35
        %s346 = sand.u32 %s51, 1
        %s347 = sand.u32 %s51, 1
        %s348 = smul.addr %s347, 64
        %s349 = scalar_lea.vmem [#allocation3], %s348
        %p350 = pneg %p64
        %p351 = pneg %p61
        %p352 = pneg %p85
        %p353 = pneg %p82
        %p354 = pneg %p106
        %p355 = pneg %p103
        %p356 = pneg %p127
        %p357 = pneg %p124
        %p358 = pneg %p148
        %p359 = pneg %p145
        %p360 = pneg %p174
        %p361 = pneg %p171
        %s362 = smul.u32 2, %s17
        %p363 = scmp.lt.s32.totalorder %s362, 3
        %s364 = scalar_select %p363, %s362, 3
        %s365 = smul.addr %s364, 8
        %s366 = scalar_lea.vmem %s6, %s365
        %s367 = smul.u32 2, %s17
        %p368 = scmp.lt.s32.totalorder %s367, 3
        %s369 = scalar_select %p368, %s367, 3
        %s370 = smul.addr %s369, 4
        %s371 = scalar_lea.vmem %s0, %s370
        %s372 = smul.u32 2, %s17
        %s373 = smul.u32 2, %s17
        %s374 = smul.u32 2, %s17
        %p375 = scmp.lt.s32.totalorder %s374, 3
        %s376 = scalar_select %p375, %s374, 3
        %s377 = smul.addr %s376, 8
        %s378 = scalar_lea.vmem %s6, %s377
        %s379 = smul.u32 2, %s17
        %v381 = vld [vmem:[%s371] sm:$0xf]
        %v382 = vld [vmem:[%s371 + $0x4] sm:$0xf]
        %v383 = vld [vmem:[%s2] sm:$0xf]
        %v384 = vld [vmem:[%s2 + $0x4] sm:$0xf]
        %v385 = vld [vmem:[%s2 + $0x8] sm:$0xf]
        %v386 = vld [vmem:[%s2 + $0xc] sm:$0xf]
        %v387 = vld [vmem:[%s4] sm:$0x1]
        %v389 = vlaneseq
        %v390 = vshrl.u32 %v389, 7
        %v391 = vsub.s32 0, %v390
        %v392 = vrot.slane %v387, %v391
        %v396 = vunpack.c.l.b16 %v381
        %v397 = vunpack.c.l.b16 %v382
        %v398 = vpack.c.b16 %v397, %v396
        %v403 = vunpack.c.l.b16 %v383
        %v404 = vunpack.c.l.b16 %v384
        %v405 = vunpack.c.l.b16 %v385
        %v406 = vunpack.c.l.b16 %v386
        %v407 = vpack.c.b16 %v404, %v403
        %v408 = vpack.c.b16 %v406, %v405
        %vm411 = vcmask 261120
        %v413 = vsel %vm411, %v398, 0
        %415 = vmatprep.subr.bf16.mxu0 0
        %416 = vmatpush1.bf16.msra.mxu0 0
        %417 = vmatprep.subr.bf16.mxu0 0
        %418 = vmatpush1.bf16.msra.mxu0 0
        %419 = vmatprep.subr.bf16.mxu0 0
        %420 = vmatpush1.bf16.msra.mxu0 0
        %421 = vmatprep.subr.bf16.mxu0 0
        %422 = vmatpush1.bf16.msra.mxu0 0
        %423 = vmatprep.subr.bf16.mxu0 0
        %424 = vmatpush1.bf16.msra.mxu0 0
        %425 = vmatprep.subr.bf16.mxu0 0
        %426 = vmatpush1.bf16.msra.mxu0 0
        %427 = vmatprep.subr.bf16.mxu0 0
        %428 = vmatpush1.bf16.msra.mxu0 %v408
        %429 = vmatprep.subr.bf16.mxu0 0
        %430 = vmatpush1.bf16.msra.mxu0 %v407
        %431 = vmatprep.subr.bf16.mxu0 0
        %432 = vmatpush2.bf16.msra.mxu0 0
        %433 = vmatprep.subr.bf16.mxu0 0
        %434 = vmatpush2.bf16.msra.mxu0 0
        %435 = vmatprep.subr.bf16.mxu0 0
        %436 = vmatpush2.bf16.msra.mxu0 0
        %437 = vmatprep.subr.bf16.mxu0 0
        %438 = vmatpush2.bf16.msra.mxu0 0
        %439 = vmatprep.subr.bf16.mxu0 0
        %440 = vmatpush2.bf16.msra.mxu0 0
        %441 = vmatprep.subr.bf16.mxu0 0
        %442 = vmatpush2.bf16.msra.mxu0 0
        %443 = vmatprep.subr.bf16.mxu0 0
        %444 = vmatpush2.bf16.msra.mxu0 0
        %445 = vmatprep.subr.bf16.mxu0 0
        %446 = vmatpush2.bf16.msra.mxu0 0
        %447 = vmatprep.mubr.bf16.mxu0 0
        %448 = vmatmul.mubr.bf16.gmra.mxu0 %v413
        %v449 = vpop.f32.mrf.mxu0
        %v450 = vadd.f32 %v392, %v449
        %v451 = vpop.f32.mrf.mxu0
        %v452 = vpop.f32.mrf.mxu0
        %v453 = vadd.f32 %v392, %v452
        %v454 = vpop.f32.mrf.mxu0
        %455 = vdwg.mxu0
        %v456 = vld [vmem:[%s5] sm:$0x1]
        %v457 = vld [vmem:[%s335] sm:$0xf]
        %v458 = vld [vmem:[%s335 + $0x4] sm:$0xf]
        %v459 = vld [vmem:[%s335 + $0x8] sm:$0xf]
        %v460 = vld [vmem:[%s335 + $0xc] sm:$0xf]
        %v461 = vld [vmem:[%s335 + $0x10] sm:$0xf]
        %v462 = vld [vmem:[%s335 + $0x14] sm:$0xf]
        %v463 = vld [vmem:[%s335 + $0x18] sm:$0xf]
        %v464 = vld [vmem:[%s335 + $0x1c] sm:$0xf]
        %v465 = vld [vmem:[%s335 + $0x20] sm:$0xf]
        %v466 = vld [vmem:[%s335 + $0x24] sm:$0xf]
        %v467 = vld [vmem:[%s335 + $0x28] sm:$0xf]
        %v468 = vld [vmem:[%s335 + $0x2c] sm:$0xf]
        %v469 = vld [vmem:[%s335 + $0x30] sm:$0xf]
        %v470 = vld [vmem:[%s335 + $0x34] sm:$0xf]
        %v471 = vld [vmem:[%s335 + $0x38] sm:$0xf]
        %v472 = vld [vmem:[%s335 + $0x3c] sm:$0xf]
        %v473 = vld [vmem:[%s3] sm:$0xf]
        %v474 = vld [vmem:[%s3 + $0x4] sm:$0xf]
        %v475 = vld [vmem:[%s3 + $0x8] sm:$0xf]
        %v476 = vld [vmem:[%s3 + $0xc] sm:$0xf]
        %v493 = vunpack.c.l.b16 %v457
        %v494 = vunpack.c.l.b16 %v458
        %v495 = vunpack.c.l.b16 %v459
        %v496 = vunpack.c.l.b16 %v460
        %v497 = vunpack.c.l.b16 %v461
        %v498 = vunpack.c.l.b16 %v462
        %v499 = vunpack.c.l.b16 %v463
        %v500 = vunpack.c.l.b16 %v464
        %v501 = vunpack.c.l.b16 %v465
        %v502 = vunpack.c.l.b16 %v466
        %v503 = vunpack.c.l.b16 %v467
        %v504 = vunpack.c.l.b16 %v468
        %v505 = vunpack.c.l.b16 %v469
        %v506 = vunpack.c.l.b16 %v470
        %v507 = vunpack.c.l.b16 %v471
        %v508 = vunpack.c.l.b16 %v472
        %v509 = vpack.c.b16 %v494, %v493
        %v510 = vpack.c.b16 %v496, %v495
        %v511 = vpack.c.b16 %v498, %v497
        %v512 = vpack.c.b16 %v500, %v499
        %v513 = vpack.c.b16 %v502, %v501
        %v514 = vpack.c.b16 %v504, %v503
        %v515 = vpack.c.b16 %v506, %v505
        %v516 = vpack.c.b16 %v508, %v507
        %v521 = vunpack.c.l.b16 %v473
        %v522 = vunpack.c.l.b16 %v474
        %v523 = vunpack.c.l.b16 %v475
        %v524 = vunpack.c.l.b16 %v476
        %v525 = vpack.c.b16 %v522, %v521
        %v526 = vpack.c.b16 %v524, %v523
        %v530 = vsel %vm411, %v509, 0
        %v533 = vsel %vm411, %v510, 0
        %v536 = vsel %vm411, %v511, 0
        %v539 = vsel %vm411, %v512, 0
        %v542 = vsel %vm411, %v513, 0
        %v545 = vsel %vm411, %v514, 0
        %v548 = vsel %vm411, %v515, 0
        %v551 = vsel %vm411, %v516, 0
        %553 = vmatprep.subr.bf16.mxu0 0
        %554 = vmatpush1.bf16.msra.mxu0 0
        %555 = vmatprep.subr.bf16.mxu0 0
        %556 = vmatpush1.bf16.msra.mxu0 0
        %557 = vmatprep.subr.bf16.mxu0 0
        %558 = vmatpush1.bf16.msra.mxu0 0
        %559 = vmatprep.subr.bf16.mxu0 0
        %560 = vmatpush1.bf16.msra.mxu0 0
        %561 = vmatprep.subr.bf16.mxu0 0
        %562 = vmatpush1.bf16.msra.mxu0 0
        %563 = vmatprep.subr.bf16.mxu0 0
        %564 = vmatpush1.bf16.msra.mxu0 0
        %565 = vmatprep.subr.bf16.mxu0 0
        %566 = vmatpush1.bf16.msra.mxu0 %v526
        %567 = vmatprep.subr.bf16.mxu0 0
        %568 = vmatpush1.bf16.msra.mxu0 %v525
        %569 = vmatprep.subr.bf16.mxu0 0
        %570 = vmatpush2.bf16.msra.mxu0 0
        %571 = vmatprep.subr.bf16.mxu0 0
        %572 = vmatpush2.bf16.msra.mxu0 0
        %573 = vmatprep.subr.bf16.mxu0 0
        %574 = vmatpush2.bf16.msra.mxu0 0
        %575 = vmatprep.subr.bf16.mxu0 0
        %576 = vmatpush2.bf16.msra.mxu0 0
        %577 = vmatprep.subr.bf16.mxu0 0
        %578 = vmatpush2.bf16.msra.mxu0 0
        %579 = vmatprep.subr.bf16.mxu0 0
        %580 = vmatpush2.bf16.msra.mxu0 0
        %581 = vmatprep.subr.bf16.mxu0 0
        %582 = vmatpush2.bf16.msra.mxu0 0
        %583 = vmatprep.subr.bf16.mxu0 0
        %584 = vmatpush2.bf16.msra.mxu0 0
        %585 = vmatprep.mubr.bf16.mxu0 0
        %586 = vmatmul.mubr.bf16.gmra.mxu0 %v530
        %v587 = vpop.f32.mrf.mxu0
        %v588 = vadd.f32 0.0, %v587
        %v589 = vpop.f32.mrf.mxu0
        %v590 = vpop.f32.mrf.mxu0
        %v591 = vadd.f32 0.0, %v590
        %v592 = vpop.f32.mrf.mxu0
        %593 = vmatprep.mubr.bf16.mxu0 0
        %594 = vmatmul.mubr.bf16.gmra.mxu0 %v533
        %v595 = vpop.f32.mrf.mxu0
        %v596 = vadd.f32 0.0, %v595
        %v597 = vpop.f32.mrf.mxu0
        %v598 = vpop.f32.mrf.mxu0
        %v599 = vadd.f32 0.0, %v598
        %v600 = vpop.f32.mrf.mxu0
        %601 = vmatprep.mubr.bf16.mxu0 0
        %602 = vmatmul.mubr.bf16.gmra.mxu0 %v536
        %v603 = vpop.f32.mrf.mxu0
        %v604 = vadd.f32 0.0, %v603
        %v605 = vpop.f32.mrf.mxu0
        %v606 = vpop.f32.mrf.mxu0
        %v607 = vadd.f32 0.0, %v606
        %v608 = vpop.f32.mrf.mxu0
        %609 = vmatprep.mubr.bf16.mxu0 0
        %610 = vmatmul.mubr.bf16.gmra.mxu0 %v539
        %v611 = vpop.f32.mrf.mxu0
        %v612 = vadd.f32 0.0, %v611
        %v613 = vpop.f32.mrf.mxu0
        %v614 = vpop.f32.mrf.mxu0
        %v615 = vadd.f32 0.0, %v614
        %v616 = vpop.f32.mrf.mxu0
        %617 = vmatprep.mubr.bf16.mxu0 0
        %618 = vmatmul.mubr.bf16.gmra.mxu0 %v542
        %v619 = vpop.f32.mrf.mxu0
        %v620 = vadd.f32 0.0, %v619
        %v621 = vpop.f32.mrf.mxu0
        %v622 = vpop.f32.mrf.mxu0
        %v623 = vadd.f32 0.0, %v622
        %v624 = vpop.f32.mrf.mxu0
        %625 = vmatprep.mubr.bf16.mxu0 0
        %626 = vmatmul.mubr.bf16.gmra.mxu0 %v545
        %v627 = vpop.f32.mrf.mxu0
        %v628 = vadd.f32 0.0, %v627
        %v629 = vpop.f32.mrf.mxu0
        %v630 = vpop.f32.mrf.mxu0
        %v631 = vadd.f32 0.0, %v630
        %v632 = vpop.f32.mrf.mxu0
        %633 = vmatprep.mubr.bf16.mxu0 0
        %634 = vmatmul.mubr.bf16.gmra.mxu0 %v548
        %v635 = vpop.f32.mrf.mxu0
        %v636 = vadd.f32 0.0, %v635
        %v637 = vpop.f32.mrf.mxu0
        %v638 = vpop.f32.mrf.mxu0
        %v639 = vadd.f32 0.0, %v638
        %v640 = vpop.f32.mrf.mxu0
        %641 = vmatprep.mubr.bf16.mxu0 0
        %642 = vmatmul.mubr.bf16.gmra.mxu0 %v551
        %v643 = vpop.f32.mrf.mxu0
        %v644 = vadd.f32 0.0, %v643
        %v645 = vpop.f32.mrf.mxu0
        %v646 = vpop.f32.mrf.mxu0
        %v647 = vadd.f32 0.0, %v646
        %v648 = vpop.f32.mrf.mxu0
        %649 = vdwg.mxu0
        %v650 = vadd.f32 %v588, %v450
        %v651 = vadd.f32 %v591, %v453
        %v652 = vadd.f32 %v596, %v450
        %v653 = vadd.f32 %v599, %v453
        %v654 = vadd.f32 %v604, %v450
        %v655 = vadd.f32 %v607, %v453
        %v656 = vadd.f32 %v612, %v450
        %v657 = vadd.f32 %v615, %v453
        %v658 = vadd.f32 %v620, %v450
        %v659 = vadd.f32 %v623, %v453
        %v660 = vadd.f32 %v628, %v450
        %v661 = vadd.f32 %v631, %v453
        %v662 = vadd.f32 %v636, %v450
        %v663 = vadd.f32 %v639, %v453
        %v664 = vadd.f32 %v644, %v450
        %v665 = vadd.f32 %v647, %v453
        %v666 = vtanh.pop %v650
        %v667 = vtanh.pop %v651
        %v668 = vtanh.pop %v652
        %v669 = vtanh.pop %v653
        %v670 = vtanh.pop %v654
        %v671 = vtanh.pop %v655
        %v672 = vtanh.pop %v656
        %v673 = vtanh.pop %v657
        %v674 = vtanh.pop %v658
        %v675 = vtanh.pop %v659
        %v676 = vtanh.pop %v660
        %v677 = vtanh.pop %v661
        %v678 = vtanh.pop %v662
        %v679 = vtanh.pop %v663
        %v680 = vtanh.pop %v664
        %v681 = vtanh.pop %v665
        %v683 = vlaneseq
        %v684 = vshrl.u32 %v683, 7
        %v685 = vsub.s32 0, %v684
        %v686 = vrot.slane %v456, %v685
        %v688 = vmul.f32 %v666, %v686
        %v689 = vmul.f32 %v667, %v686
        %v690 = vmul.f32 %v668, %v686
        %v691 = vmul.f32 %v669, %v686
        %v692 = vmul.f32 %v670, %v686
        %v693 = vmul.f32 %v671, %v686
        %v694 = vmul.f32 %v672, %v686
        %v695 = vmul.f32 %v673, %v686
        %v696 = vmul.f32 %v674, %v686
        %v697 = vmul.f32 %v675, %v686
        %v698 = vmul.f32 %v676, %v686
        %v699 = vmul.f32 %v677, %v686
        %v700 = vmul.f32 %v678, %v686
        %v701 = vmul.f32 %v679, %v686
        %v702 = vmul.f32 %v680, %v686
        %v703 = vmul.f32 %v681, %v686
        %v704 = vsel %vm411, %v688, 0.0
        %705 = vadd.xlane.f32.xlu0 %v704
        %v706 = vpop.xlane.xlu0 %705
        %v707 = vsel %vm411, %v689, 0.0
        %708 = vadd.xlane.f32.xlu0 %v707
        %v709 = vpop.xlane.xlu0 %708
        %v710 = vsel %vm411, %v690, 0.0
        %711 = vadd.xlane.f32.xlu0 %v710
        %v712 = vpop.xlane.xlu0 %711
        %v713 = vsel %vm411, %v691, 0.0
        %714 = vadd.xlane.f32.xlu0 %v713
        %v715 = vpop.xlane.xlu0 %714
        %v716 = vsel %vm411, %v692, 0.0
        %717 = vadd.xlane.f32.xlu0 %v716
        %v718 = vpop.xlane.xlu0 %717
        %v719 = vsel %vm411, %v693, 0.0
        %720 = vadd.xlane.f32.xlu0 %v719
        %v721 = vpop.xlane.xlu0 %720
        %v722 = vsel %vm411, %v694, 0.0
        %723 = vadd.xlane.f32.xlu0 %v722
        %v724 = vpop.xlane.xlu0 %723
        %v725 = vsel %vm411, %v695, 0.0
        %726 = vadd.xlane.f32.xlu0 %v725
        %v727 = vpop.xlane.xlu0 %726
        %v728 = vsel %vm411, %v696, 0.0
        %729 = vadd.xlane.f32.xlu0 %v728
        %v730 = vpop.xlane.xlu0 %729
        %v731 = vsel %vm411, %v697, 0.0
        %732 = vadd.xlane.f32.xlu0 %v731
        %v733 = vpop.xlane.xlu0 %732
        %v734 = vsel %vm411, %v698, 0.0
        %735 = vadd.xlane.f32.xlu0 %v734
        %v736 = vpop.xlane.xlu0 %735
        %v737 = vsel %vm411, %v699, 0.0
        %738 = vadd.xlane.f32.xlu0 %v737
        %v739 = vpop.xlane.xlu0 %738
        %v740 = vsel %vm411, %v700, 0.0
        %741 = vadd.xlane.f32.xlu0 %v740
        %v742 = vpop.xlane.xlu0 %741
        %v743 = vsel %vm411, %v701, 0.0
        %744 = vadd.xlane.f32.xlu0 %v743
        %v745 = vpop.xlane.xlu0 %744
        %v746 = vsel %vm411, %v702, 0.0
        %747 = vadd.xlane.f32.xlu0 %v746
        %v748 = vpop.xlane.xlu0 %747
        %v749 = vsel %vm411, %v703, 0.0
        %750 = vadd.xlane.f32.xlu0 %v749
        %v751 = vpop.xlane.xlu0 %750
        %v768 = vlaneseq
        %v769 = vand.u32 %v768, 127
        %v770 = vlaneseq
        %v771 = vshrl.u32 %v770, 7
        %v772 = vsub.s32 %v769, %v771
        %v773 = vrot.slane %v706, %v772
        %v774 = vadd.s32 %v769, 4294967288
        %v775 = vlaneseq
        %v776 = vshrl.u32 %v775, 7
        %v777 = vsub.s32 %v774, %v776
        %v778 = vrot.slane %v709, %v777
        %vm779 = vcmask 130112
        %v780 = vsel %vm779, %v778, %v773
        %v781 = vlaneseq
        %v782 = vshrl.u32 %v781, 7
        %v783 = vsub.s32 %v769, %v782
        %v784 = vrot.slane %v712, %v783
        %v785 = vlaneseq
        %v786 = vshrl.u32 %v785, 7
        %v787 = vsub.s32 %v774, %v786
        %v788 = vrot.slane %v715, %v787
        %v789 = vsel %vm779, %v788, %v784
        %v790 = vlaneseq
        %v791 = vshrl.u32 %v790, 7
        %v792 = vsub.s32 %v769, %v791
        %v793 = vrot.slane %v718, %v792
        %v794 = vlaneseq
        %v795 = vshrl.u32 %v794, 7
        %v796 = vsub.s32 %v774, %v795
        %v797 = vrot.slane %v721, %v796
        %v798 = vsel %vm779, %v797, %v793
        %v799 = vlaneseq
        %v800 = vshrl.u32 %v799, 7
        %v801 = vsub.s32 %v769, %v800
        %v802 = vrot.slane %v724, %v801
        %v803 = vlaneseq
        %v804 = vshrl.u32 %v803, 7
        %v805 = vsub.s32 %v774, %v804
        %v806 = vrot.slane %v727, %v805
        %v807 = vsel %vm779, %v806, %v802
        %v808 = vlaneseq
        %v809 = vshrl.u32 %v808, 7
        %v810 = vsub.s32 %v769, %v809
        %v811 = vrot.slane %v730, %v810
        %v812 = vlaneseq
        %v813 = vshrl.u32 %v812, 7
        %v814 = vsub.s32 %v774, %v813
        %v815 = vrot.slane %v733, %v814
        %v816 = vsel %vm779, %v815, %v811
        %v817 = vlaneseq
        %v818 = vshrl.u32 %v817, 7
        %v819 = vsub.s32 %v769, %v818
        %v820 = vrot.slane %v736, %v819
        %v821 = vlaneseq
        %v822 = vshrl.u32 %v821, 7
        %v823 = vsub.s32 %v774, %v822
        %v824 = vrot.slane %v739, %v823
        %v825 = vsel %vm779, %v824, %v820
        %v826 = vlaneseq
        %v827 = vshrl.u32 %v826, 7
        %v828 = vsub.s32 %v769, %v827
        %v829 = vrot.slane %v742, %v828
        %v830 = vlaneseq
        %v831 = vshrl.u32 %v830, 7
        %v832 = vsub.s32 %v774, %v831
        %v833 = vrot.slane %v745, %v832
        %v834 = vsel %vm779, %v833, %v829
        %v835 = vlaneseq
        %v836 = vshrl.u32 %v835, 7
        %v837 = vsub.s32 %v769, %v836
        %v838 = vrot.slane %v748, %v837
        %v839 = vlaneseq
        %v840 = vshrl.u32 %v839, 7
        %v841 = vsub.s32 %v774, %v840
        %v842 = vrot.slane %v751, %v841
        %v843 = vsel %vm779, %v842, %v838
        %vm844 = vcmask 1041409
        %v845 = vsel %vm844, %v789, %v780
        %vm846 = vcmask 1042434
        %v847 = vsel %vm846, %v798, %v845
        %vm848 = vcmask 1043459
        %v849 = vsel %vm848, %v807, %v847
        %vm850 = vcmask 1044484
        %v851 = vsel %vm850, %v816, %v849
        %vm852 = vcmask 1045509
        %v853 = vsel %vm852, %v825, %v851
        %vm854 = vcmask 1046534
        %v855 = vsel %vm854, %v834, %v853
        %vm856 = vcmask 1047559
        %v857 = vsel %vm856, %v843, %v855
        %vm859 = vcmask 130048
        %860 = vst.msk [vmem:[#allocation2] sm:$0xff] %vm859, %v857
        %v861 = vld [vmem:[#allocation2] sm:$0xff]
        %862 = vxpose.xlu0.b32.start [1/16] %v861, 128
        %863 = vxpose.xlu0.b32.cont [2/16] 0.0, 128
        %864 = vxpose.xlu0.b32.cont [3/16] 0.0, 128
        %865 = vxpose.xlu0.b32.cont [4/16] 0.0, 128
        %866 = vxpose.xlu0.b32.cont [5/16] 0.0, 128
        %867 = vxpose.xlu0.b32.cont [6/16] 0.0, 128
        %868 = vxpose.xlu0.b32.cont [7/16] 0.0, 128
        %869 = vxpose.xlu0.b32.cont [8/16] 0.0, 128
        %870 = vxpose.xlu0.b32.cont [9/16] 0.0, 128
        %871 = vxpose.xlu0.b32.cont [10/16] 0.0, 128
        %872 = vxpose.xlu0.b32.cont [11/16] 0.0, 128
        %873 = vxpose.xlu0.b32.cont [12/16] 0.0, 128
        %874 = vxpose.xlu0.b32.cont [13/16] 0.0, 128
        %875 = vxpose.xlu0.b32.cont [14/16] 0.0, 128
        %876 = vxpose.xlu0.b32.cont [15/16] 0.0, 128
        %877 = vxpose.xlu0.b32.end [16/16] 0.0, 128
        %v878 = vpop.trf.xlu0
        %v879 = vpop.trf.xlu0
        %v880 = vpop.trf.xlu0
        %v881 = vpop.trf.xlu0
        %v882 = vpop.trf.xlu0
        %v883 = vpop.trf.xlu0
        %v884 = vpop.trf.xlu0
        %v885 = vpop.trf.xlu0
        %v886 = vpop.trf.xlu0
        %v887 = vpop.trf.xlu0
        %v888 = vpop.trf.xlu0
        %v889 = vpop.trf.xlu0
        %v890 = vpop.trf.xlu0
        %v891 = vpop.trf.xlu0
        %v892 = vpop.trf.xlu0
        %v893 = vpop.trf.xlu0
        %vm894 = vcmask 64512
        %v895 = vsel %vm894, %v878, -inf
        %896 = vmax.xlane.f32.xlu0 %v895
        %v897 = vpop.xlane.xlu0 %896
        %v898 = vsel %vm894, %v879, -inf
        %899 = vmax.xlane.f32.xlu0 %v898
        %v900 = vpop.xlane.xlu0 %899
        %v901 = vsub.f32 %v878, %v897
        %v902 = vsub.f32 %v879, %v900
        %v903 = vmul.f32 %v901, 1.442695
        %v904 = vpow.pop %v903
        %v905 = vmul.f32 %v902, 1.442695
        %v906 = vpow.pop %v905
        %v907 = vsel %vm894, %v904, 0.0
        %908 = vadd.xlane.f32.xlu0 %v907
        %v909 = vpop.xlane.xlu0 %908
        %v910 = vsel %vm894, %v906, 0.0
        %911 = vadd.xlane.f32.xlu0 %v910
        %v912 = vpop.xlane.xlu0 %911
        %v913 = vrcp.pop %v909
        %v914 = vmul.f32 %v904, %v913
        %v915 = vrcp.pop %v912
        %v916 = vmul.f32 %v906, %v915
        %917 = vst.msk [vmem:[%s378] sm:$0xff] %vm894, %v914
        %918 = vst.msk [vmem:[%s378 + $0x8] sm:$0xff] %vm894, %v916
        %s919 = smul.u32 2, %s17
        %p920 = scmp.lt.s32.totalorder %s919, 3
        %s921 = scalar_select %p920, %s919, 3
        %s922 = smul.addr %s921, 8
        %s923 = scalar_lea.vmem %s6, %s922
        // Predicated region
        $region86: #{_attn_impl.1} parent=80 // pred_check
          %p924 = pneg %p171
        $region87: #{_attn_impl.1} parent=80 // pred_check_branch
          %926 = sbr.rel (%p924) target = $region89
        $region88: #{_attn_impl.1} parent=80 // pred_region
          %s927 = smul.u32 2, %s17
        $region89: #{_attn_impl.1} parent=80 // pred_fallthru
          _
      $region81: #{_attn_impl.1} parent=5 // pred_fallthru
        _
      %p928 = scmp.le.s32.totalorder 2, %s12
      // Predicated region
      $region90: #{_attn_impl.1} parent=5 // pred_check
        %p929 = pneg %p928
      $region91: #{_attn_impl.1} parent=5 // pred_check_branch
        %931 = sbr.rel (%p929) target = $region93
      $region92: #{_attn_impl.1} parent=5 // pred_region
        %s932 = ssub.s32 %s12, 2
        // Predicated region
        $region94: #{_attn_impl.1} parent=92 // pred_check
          %p933 = pneg %p177
        $region95: #{_attn_impl.1} parent=92 // pred_check_branch
          %935 = sbr.rel (%p933) target = $region97
        $region96: #{_attn_impl.1} parent=92 // pred_region
          %s936 = smul.u32 2, %s18
          %p937 = scmp.lt.s32.totalorder %s936, 3
          %s938 = scalar_select %p937, %s936, 3
          %s939 = smul.addr %s938, 8
          %s940 = scalar_lea.vmem %s6, %s939
        $region97: #{_attn_impl.1} parent=92 // pred_fallthru
          _
      $region93: #{_attn_impl.1} parent=5 // pred_fallthru
        _
    $region6: #{_attn_impl.1} parent=1 // loop_footer
      %s16 = sadd.s32 1, %s12
    $region7: #{_attn_impl.1} parent=1 // loop_footer_branch
      %11 = sbr.rel target = $region3
    $region8: #{_attn_impl.1} parent=1 // loop_exit
      _

// kernel: _attn_impl.1
$region0: #{_attn_impl.1}
  #allocation0 [shape = 'u32[]', space=smem, size = 0x4, offset = 0x4, fixed_abs, tag = 'smem constant byte address 0x4 - core index']
  #allocation1 [shape = 'u32[144,128]{1,0:T(1,128)}', space=vmem, size = 0x12000, scoped, tag = 'internal scratch']
  #allocation2 [shape = 'f32[8,16]{1,0:T(8,128)}', space=vmem, size = 0x1000, scoped, tag = 'scratch operand']
  %s0 = inlined_call_operand.vmem [shape: bf16[32,32], index: 0, kind: input, shape index: {}]
  %s1 = inlined_call_operand.vmem [shape: bf16[8,32,32], index: 1, kind: input, shape index: {}]
  %s2 = inlined_call_operand.vmem [shape: bf16[32,32], index: 2, kind: input, shape index: {}]
  %s3 = inlined_call_operand.vmem [shape: bf16[32,32], index: 3, kind: input, shape index: {}]
  %s4 = inlined_call_operand.vmem [shape: f32[1,32], index: 4, kind: input, shape index: {}]
  %s5 = inlined_call_operand.vmem [shape: f32[1,32], index: 5, kind: input, shape index: {}]
  %s6 = inlined_call_operand.vmem [shape: f32[32,8], index: 6, kind: output, shape index: {}]
  %s7 = sld [smem:[#allocation0]]
  $region98: #{_attn_impl.1} parent=0
    _
  %s9 = ssub.s32 1, %s7
  %s10 = scalar_select 0, %s9, %s7
  $region1: #{_attn_impl.1} parent=0
    #allocation3 [shape = 'u8[65536]{0}', space=vmem, size = 0x10000, scoped, tag = 'input window, operand 1']
    loop: start=0, step=1, limit=4
    $region2: #{_attn_impl.1} parent=1 // loop_pre_header
      _
    $region3: #{_attn_impl.1} parent=1 // loop_header
      %s12 = sphi 0, %s16
      %p13 = scmp.ge.s32.totalorder %s12, 4
      %s22 = sphi 0, %s24
      %s25 = sphi 0, %s22
      %s26 = sphi 0, %s25
      %s42 = sphi 0, %s26
      %s48 = sphi 0, %s50
      %s51 = sphi 0, %s48
      %s52 = sphi 0, %s51
      %s68 = sphi 0, %s52
      %s72 = sphi 0, %s72
      %s74 = sphi 0, %s72
      %s75 = sphi 0, %s74
      %s89 = sphi 0, %s75
      %s93 = sphi 0, %s93
      %s95 = sphi 0, %s93
      %s96 = sphi 0, %s95
      %s110 = sphi 0, %s96
      %s114 = sphi 0, %s114
      %s116 = sphi 0, %s114
      %s117 = sphi 0, %s116
      %s131 = sphi 0, %s117
      %s135 = sphi 0, %s135
      %s137 = sphi 0, %s135
      %s138 = sphi 0, %s137
      %s152 = sphi 0, %s138
      %s158 = sphi 0, %s160
      %s161 = sphi 0, %s158
      %s162 = sphi 0, %s161
      %s178 = sphi 0, %s162
    $region4: #{_attn_impl.1} parent=1 // loop_header_branch
      %15 = sbr.rel (%p13) target = $region8
    $region5: #{_attn_impl.1} parent=1 // loop_body
      %s17 = ssub.s32 %s12, 1
      %s18 = ssub.s32 %s12, 2
      %s19 = sadd.s32 %s12, 1
      %s20 = ssub.s32 %s12, %s19
      %p21 = scmp.eq.s32.totalorder %s20, 0
      %s23 = sadd.s32 %s22, 1
      %s24 = scalar_select %p21, %s22, %s23
      %p27 = pneg %p21
      %p28 = scmp.eq.s32.totalorder %s12, 1
      %p29 = por %p27, %p28
      %p30 = scmp.ne.s32.totalorder %s22, %s25
      %p31 = scmp.eq.s32.totalorder %s12, 0
      %p32 = por %p30, %p31
      %p33 = scmp.ne.s32.totalorder %s22, %s25
      %p34 = scmp.eq.s32.totalorder %s17, 1
      %p35 = por %p33, %p34
      %p36 = scmp.ne.s32.totalorder %s25, %s26
      %p37 = scmp.eq.s32.totalorder %s17, 0
      %p38 = por %p36, %p37
      %p39 = scmp.ne.s32.totalorder %s25, %s26
      %p40 = scmp.eq.s32.totalorder %s18, 1
      %p41 = por %p39, %p40
      %p43 = scmp.ne.s32.totalorder %s26, %s42
      %p44 = scmp.eq.s32.totalorder %s18, 0
      %p45 = por %p43, %p44
      %s46 = ssub.s32 %s12, %s19
      %p47 = scmp.eq.s32.totalorder %s46, 0
      %s49 = sadd.s32 %s48, 1
      %s50 = scalar_select %p47, %s48, %s49
      %p53 = pneg %p47
      %p54 = scmp.eq.s32.totalorder %s12, 1
      %p55 = por %p53, %p54
      %p56 = scmp.ne.s32.totalorder %s48, %s51
      %p57 = scmp.eq.s32.totalorder %s12, 0
      %p58 = por %p56, %p57
      %p59 = scmp.ne.s32.totalorder %s48, %s51
      %p60 = scmp.eq.s32.totalorder %s17, 1
      %p61 = por %p59, %p60
      %p62 = scmp.ne.s32.totalorder %s51, %s52
      %p63 = scmp.eq.s32.totalorder %s17, 0
      %p64 = por %p62, %p63
      %p65 = scmp.ne.s32.totalorder %s51, %s52
      %p66 = scmp.eq.s32.totalorder %s18, 1
      %p67 = por %p65, %p66
      %p69 = scmp.ne.s32.totalorder %s52, %s68
      %p70 = scmp.eq.s32.totalorder %s18, 0
      %p71 = por %p69, %p70
      %s73 = sadd.s32 %s72, 1
      %p76 = scmp.eq.s32.totalorder %s12, 1
      %p77 = scmp.ne.s32.totalorder %s72, %s74
      %p78 = scmp.eq.s32.totalorder %s12, 0
      %p79 = por %p77, %p78
      %p80 = scmp.ne.s32.totalorder %s72, %s74
      %p81 = scmp.eq.s32.totalorder %s17, 1
      %p82 = por %p80, %p81
      %p83 = scmp.ne.s32.totalorder %s74, %s75
      %p84 = scmp.eq.s32.totalorder %s17, 0
      %p85 = por %p83, %p84
      %p86 = scmp.ne.s32.totalorder %s74, %s75
      %p87 = scmp.eq.s32.totalorder %s18, 1
      %p88 = por %p86, %p87
      %p90 = scmp.ne.s32.totalorder %s75, %s89
      %p91 = scmp.eq.s32.totalorder %s18, 0
      %p92 = por %p90, %p91
      %s94 = sadd.s32 %s93, 1
      %p97 = scmp.eq.s32.totalorder %s12, 1
      %p98 = scmp.ne.s32.totalorder %s93, %s95
      %p99 = scmp.eq.s32.totalorder %s12, 0
      %p100 = por %p98, %p99
      %p101 = scmp.ne.s32.totalorder %s93, %s95
      %p102 = scmp.eq.s32.totalorder %s17, 1
      %p103 = por %p101, %p102
      %p104 = scmp.ne.s32.totalorder %s95, %s96
      %p105 = scmp.eq.s32.totalorder %s17, 0
      %p106 = por %p104, %p105
      %p107 = scmp.ne.s32.totalorder %s95, %s96
      %p108 = scmp.eq.s32.totalorder %s18, 1
      %p109 = por %p107, %p108
      %p111 = scmp.ne.s32.totalorder %s96, %s110
      %p112 = scmp.eq.s32.totalorder %s18, 0
      %p113 = por %p111, %p112
      %s115 = sadd.s32 %s114, 1
      %p118 = scmp.eq.s32.totalorder %s12, 1
      %p119 = scmp.ne.s32.totalorder %s114, %s116
      %p120 = scmp.eq.s32.totalorder %s12, 0
      %p121 = por %p119, %p120
      %p122 = scmp.ne.s32.totalorder %s114, %s116
      %p123 = scmp.eq.s32.totalorder %s17, 1
      %p124 = por %p122, %p123
      %p125 = scmp.ne.s32.totalorder %s116, %s117
      %p126 = scmp.eq.s32.totalorder %s17, 0
      %p127 = por %p125, %p126
      %p128 = scmp.ne.s32.totalorder %s116, %s117
      %p129 = scmp.eq.s32.totalorder %s18, 1
      %p130 = por %p128, %p129
      %p132 = scmp.ne.s32.totalorder %s117, %s131
      %p133 = scmp.eq.s32.totalorder %s18, 0
      %p134 = por %p132, %p133
      %s136 = sadd.s32 %s135, 1
      %p139 = scmp.eq.s32.totalorder %s12, 1
      %p140 = scmp.ne.s32.totalorder %s135, %s137
      %p141 = scmp.eq.s32.totalorder %s12, 0
      %p142 = por %p140, %p141
      %p143 = scmp.ne.s32.totalorder %s135, %s137
      %p144 = scmp.eq.s32.totalorder %s17, 1
      %p145 = por %p143, %p144
      %p146 = scmp.ne.s32.totalorder %s137, %s138
      %p147 = scmp.eq.s32.totalorder %s17, 0
      %p148 = por %p146, %p147
      %p149 = scmp.ne.s32.totalorder %s137, %s138
      %p150 = scmp.eq.s32.totalorder %s18, 1
      %p151 = por %p149, %p150
      %p153 = scmp.ne.s32.totalorder %s138, %s152
      %p154 = scmp.eq.s32.totalorder %s18, 0
      %p155 = por %p153, %p154
      %s156 = ssub.s32 %s12, %s19
      %p157 = scmp.eq.s32.totalorder %s156, 0
      %s159 = sadd.s32 %s158, 1
      %s160 = scalar_select %p157, %s158, %s159
      %p163 = pneg %p157
      %p164 = scmp.eq.s32.totalorder %s12, 1
      %p165 = por %p163, %p164
      %p166 = scmp.ne.s32.totalorder %s158, %s161
      %p167 = scmp.eq.s32.totalorder %s12, 0
      %p168 = por %p166, %p167
      %p169 = scmp.ne.s32.totalorder %s158, %s161
      %p170 = scmp.eq.s32.totalorder %s17, 1
      %p171 = por %p169, %p170
      %p172 = scmp.ne.s32.totalorder %s161, %s162
      %p173 = scmp.eq.s32.totalorder %s17, 0
      %p174 = por %p172, %p173
      %p175 = scmp.ne.s32.totalorder %s161, %s162
      %p176 = scmp.eq.s32.totalorder %s18, 1
      %p177 = por %p175, %p176
      %p179 = scmp.ne.s32.totalorder %s162, %s178
      %p180 = scmp.eq.s32.totalorder %s18, 0
      %p181 = por %p179, %p180
      %p182 = scmp.le.s32.totalorder 1, %s12
      %p183 = scmp.lt.s32.totalorder %s12, 3
      %p184 = pnand %p182, %p183
      %p185 = pneg %p184
      // Predicated region
      $region9: #{_attn_impl.1} parent=5 // pred_check
        _
      $region10: #{_attn_impl.1} parent=5 // pred_check_branch
        %187 = sbr.rel (%p184) target = $region12
      $region11: #{_attn_impl.1} parent=5 // pred_region
        %s188 = ssub.s32 %s12, 1
        // Predicated region
        $region13: #{_attn_impl.1} parent=11 // pred_check
          %p189 = pneg %p85
        $region14: #{_attn_impl.1} parent=11 // pred_check_branch
          %191 = sbr.rel (%p189) target = $region16
        $region15: #{_attn_impl.1} parent=11 // pred_region
          _
        $region16: #{_attn_impl.1} parent=11 // pred_fallthru
          _
        // Predicated region
        $region17: #{_attn_impl.1} parent=11 // pred_check
          %p192 = pneg %p106
        $region18: #{_attn_impl.1} parent=11 // pred_check_branch
          %194 = sbr.rel (%p192) target = $region20
        $region19: #{_attn_impl.1} parent=11 // pred_region
          _
        $region20: #{_attn_impl.1} parent=11 // pred_fallthru
          _
        // Predicated region
        $region21: #{_attn_impl.1} parent=11 // pred_check
          %p195 = pneg %p127
        $region22: #{_attn_impl.1} parent=11 // pred_check_branch
          %197 = sbr.rel (%p195) target = $region24
        $region23: #{_attn_impl.1} parent=11 // pred_region
          _
        $region24: #{_attn_impl.1} parent=11 // pred_fallthru
          _
        // Predicated region
        $region25: #{_attn_impl.1} parent=11 // pred_check
          %p198 = pneg %p148
        $region26: #{_attn_impl.1} parent=11 // pred_check_branch
          %200 = sbr.rel (%p198) target = $region28
        $region27: #{_attn_impl.1} parent=11 // pred_region
          _
        $region28: #{_attn_impl.1} parent=11 // pred_fallthru
          _
      $region12: #{_attn_impl.1} parent=5 // pred_fallthru
        _
      %p201 = scmp.lt.s32.totalorder %s12, 2
      // Predicated region
      $region29: #{_attn_impl.1} parent=5 // pred_check
        %p202 = pneg %p201
      $region30: #{_attn_impl.1} parent=5 // pred_check_branch
        %204 = sbr.rel (%p202) target = $region32
      $region31: #{_attn_impl.1} parent=5 // pred_region
        // Predicated region
        $region33: #{_attn_impl.1} parent=31 // pred_check
          %p205 = pneg %p32
        $region34: #{_attn_impl.1} parent=31 // pred_check_branch
          %207 = sbr.rel (%p205) target = $region36
        $region35: #{_attn_impl.1} parent=31 // pred_region
          %s208 = smul.u32 2, %s12
          %p209 = scmp.lt.s32.totalorder %s208, 3
          %s210 = scalar_select %p209, %s208, 3
          %s211 = smul.addr %s210, 4
          %s212 = scalar_lea.vmem %s0, %s211
          %s213 = smul.u32 2, %s12
        $region36: #{_attn_impl.1} parent=31 // pred_fallthru
          _
        // Predicated region
        $region37: #{_attn_impl.1} parent=31 // pred_check
          %p214 = pneg %p58
        $region38: #{_attn_impl.1} parent=31 // pred_check_branch
          %216 = sbr.rel (%p214) target = $region40
        $region39: #{_attn_impl.1} parent=31 // pred_region
          %s217 = sand.u32 %s48, 1
          %s218 = sand.u32 %s48, 1
          %s219 = smul.addr %s218, 64
          %s220 = scalar_lea.vmem [#allocation3], %s219
          %s221 = smul.u32 2, %s12
          %s222 = smul.addr %s221, 4
          %s223 = scalar_lea.vmem %s1, %s222
          // Predicated region
          $region41: #{_attn_impl.1} parent=39 // pred_check
            _
          $region42: #{_attn_impl.1} parent=39 // pred_check_branch
            %225 = sbr.rel (0) target = $region44
          $region43: #{_attn_impl.1} parent=39 // pred_region
            // Predicated region
            $region45: #{_attn_impl.1} parent=43 // pred_check
              _
            $region46: #{_attn_impl.1} parent=43 // pred_check_branch
              %227 = sbr.rel target = $region48
            $region47: #{_attn_impl.1} parent=43 // pred_region
              // Predicated region
              $region60: #{_attn_impl.1} parent=47 // pred_check
                _
              $region61: #{_attn_impl.1} parent=47 // pred_check_branch
                %273 = sbr.rel (0) target = $region63
              $region62: #{_attn_impl.1} parent=47 // pred_region
                loop: start=0, step=1, limit=1
                $region64: #{_attn_impl.1} parent=62 // loop_pre_header
                  _
                $region65: #{_attn_impl.1} parent=62 // loop_header
                  %s275 = sphi 0, %s279
                  %p276 = scmp.ge.s32.totalorder %s275, 1
                  %s280 = sphi %s223, %s223
                  %s281 = sphi %s220, %s220
                $region66: #{_attn_impl.1} parent=62 // loop_header_branch
                  %278 = sbr.rel (%p276) target = $region70
                $region67: #{_attn_impl.1} parent=62 // loop_body
                  _
                $region68: #{_attn_impl.1} parent=62 // loop_footer
                  %s279 = sadd.s32 1, %s275
                $region69: #{_attn_impl.1} parent=62 // loop_footer_branch
                  %274 = sbr.rel target = $region65
                $region70: #{_attn_impl.1} parent=62 // loop_exit
                  _
                %s283 = ssub.s32 16, 1
                loop: start=0, step=1, limit=1
                $region71: #{_attn_impl.1} parent=62 // loop_pre_header
                  _
                $region72: #{_attn_impl.1} parent=62 // loop_header
                  %s285 = sphi 0, %s289
                  %p286 = scmp.ge.s32.totalorder %s285, 1
                  %s290 = sphi %s223, %s223
                  %s291 = sphi %s220, %s220
                $region73: #{_attn_impl.1} parent=62 // loop_header_branch
                  %288 = sbr.rel (%p286) target = $region77
                $region74: #{_attn_impl.1} parent=62 // loop_body
                  %v292 = vld [vmem:[%s290] sm:%s283]
                  %293 = vst [vmem:[%s291] sm:%s283] %v292
                  %v294 = vld [vmem:[%s290 + $0x4] sm:%s283]
                  %295 = vst [vmem:[%s291 + $0x4] sm:%s283] %v294
                  %v296 = vld [vmem:[%s290 + $0x10] sm:%s283]
                  %297 = vst [vmem:[%s291 + $0x8] sm:%s283] %v296
                  %v298 = vld [vmem:[%s290 + $0x14] sm:%s283]
                  %299 = vst [vmem:[%s291 + $0xc] sm:%s283] %v298
                  %v300 = vld [vmem:[%s290 + $0x20] sm:%s283]
                  %301 = vst [vmem:[%s291 + $0x10] sm:%s283] %v300
                  %v302 = vld [vmem:[%s290 + $0x24] sm:%s283]
                  %303 = vst [vmem:[%s291 + $0x14] sm:%s283] %v302
                  %v304 = vld [vmem:[%s290 + $0x30] sm:%s283]
                  %305 = vst [vmem:[%s291 + $0x18] sm:%s283] %v304
                  %v306 = vld [vmem:[%s290 + $0x34] sm:%s283]
                  %307 = vst [vmem:[%s291 + $0x1c] sm:%s283] %v306
                  %v308 = vld [vmem:[%s290 + $0x40] sm:%s283]
                  %309 = vst [vmem:[%s291 + $0x20] sm:%s283] %v308
                  %v310 = vld [vmem:[%s290 + $0x44] sm:%s283]
                  %311 = vst [vmem:[%s291 + $0x24] sm:%s283] %v310
                  %v312 = vld [vmem:[%s290 + $0x50] sm:%s283]
                  %313 = vst [vmem:[%s291 + $0x28] sm:%s283] %v312
                  %v314 = vld [vmem:[%s290 + $0x54] sm:%s283]
                  %315 = vst [vmem:[%s291 + $0x2c] sm:%s283] %v314
                  %v316 = vld [vmem:[%s290 + $0x60] sm:%s283]
                  %317 = vst [vmem:[%s291 + $0x30] sm:%s283] %v316
                  %v318 = vld [vmem:[%s290 + $0x64] sm:%s283]
                  %319 = vst [vmem:[%s291 + $0x34] sm:%s283] %v318
                  %v320 = vld [vmem:[%s290 + $0x70] sm:%s283]
                  %321 = vst [vmem:[%s291 + $0x38] sm:%s283] %v320
                  %v322 = vld [vmem:[%s290 + $0x74] sm:%s283]
                  %323 = vst [vmem:[%s291 + $0x3c] sm:%s283] %v322
                $region75: #{_attn_impl.1} parent=62 // loop_footer
                  %s289 = sadd.s32 1, %s285
                $region76: #{_attn_impl.1} parent=62 // loop_footer_branch
                  %284 = sbr.rel target = $region72
                $region77: #{_attn_impl.1} parent=62 // loop_exit
                  _
              $region63: #{_attn_impl.1} parent=47 // pred_fallthru
                _
            $region48: #{_attn_impl.1} parent=43 // pred_fallthru
              _
            // Predicated region
            $region49: #{_attn_impl.1} parent=43 // pred_check
              _
            $region50: #{_attn_impl.1} parent=43 // pred_check_branch
              %229 = sbr.rel (0) target = $region52
            $region51: #{_attn_impl.1} parent=43 // pred_region
              %s231 = ssub.s32 16, 1
              loop: start=0, step=1, limit=1
              $region53: #{_attn_impl.1} parent=51 // loop_pre_header
                _
              $region54: #{_attn_impl.1} parent=51 // loop_header
                %s233 = sphi 0, %s237
                %p234 = scmp.ge.s32.totalorder %s233, 1
                %s238 = sphi %s223, %s223
                %s239 = sphi %s220, %s220
              $region55: #{_attn_impl.1} parent=51 // loop_header_branch
                %236 = sbr.rel (%p234) target = $region59
              $region56: #{_attn_impl.1} parent=51 // loop_body
                %v240 = vld [vmem:[%s238] sm:%s231]
                %241 = vst [vmem:[%s239] sm:%s231] %v240
                %v242 = vld [vmem:[%s238 + $0x4] sm:%s231]
                %243 = vst [vmem:[%s239 + $0x4] sm:%s231] %v242
                %v244 = vld [vmem:[%s238 + $0x10] sm:%s231]
                %245 = vst [vmem:[%s239 + $0x8] sm:%s231] %v244
                %v246 = vld [vmem:[%s238 + $0x14] sm:%s231]
                %247 = vst [vmem:[%s239 + $0xc] sm:%s231] %v246
                %v248 = vld [vmem:[%s238 + $0x20] sm:%s231]
                %249 = vst [vmem:[%s239 + $0x10] sm:%s231] %v248
                %v250 = vld [vmem:[%s238 + $0x24] sm:%s231]
                %251 = vst [vmem:[%s239 + $0x14] sm:%s231] %v250
                %v252 = vld [vmem:[%s238 + $0x30] sm:%s231]
                %253 = vst [vmem:[%s239 + $0x18] sm:%s231] %v252
                %v254 = vld [vmem:[%s238 + $0x34] sm:%s231]
                %255 = vst [vmem:[%s239 + $0x1c] sm:%s231] %v254
                %v256 = vld [vmem:[%s238 + $0x40] sm:%s231]
                %257 = vst [vmem:[%s239 + $0x20] sm:%s231] %v256
                %v258 = vld [vmem:[%s238 + $0x44] sm:%s231]
                %259 = vst [vmem:[%s239 + $0x24] sm:%s231] %v258
                %v260 = vld [vmem:[%s238 + $0x50] sm:%s231]
                %261 = vst [vmem:[%s239 + $0x28] sm:%s231] %v260
                %v262 = vld [vmem:[%s238 + $0x54] sm:%s231]
                %263 = vst [vmem:[%s239 + $0x2c] sm:%s231] %v262
                %v264 = vld [vmem:[%s238 + $0x60] sm:%s231]
                %265 = vst [vmem:[%s239 + $0x30] sm:%s231] %v264
                %v266 = vld [vmem:[%s238 + $0x64] sm:%s231]
                %267 = vst [vmem:[%s239 + $0x34] sm:%s231] %v266
                %v268 = vld [vmem:[%s238 + $0x70] sm:%s231]
                %269 = vst [vmem:[%s239 + $0x38] sm:%s231] %v268
                %v270 = vld [vmem:[%s238 + $0x74] sm:%s231]
                %271 = vst [vmem:[%s239 + $0x3c] sm:%s231] %v270
              $region57: #{_attn_impl.1} parent=51 // loop_footer
                %s237 = sadd.s32 1, %s233
              $region58: #{_attn_impl.1} parent=51 // loop_footer_branch
                %232 = sbr.rel target = $region54
              $region59: #{_attn_impl.1} parent=51 // loop_exit
                _
            $region52: #{_attn_impl.1} parent=43 // pred_fallthru
              _
          $region44: #{_attn_impl.1} parent=39 // pred_fallthru
            _
          %324 = vnop
        $region40: #{_attn_impl.1} parent=31 // pred_fallthru
          _
      $region32: #{_attn_impl.1} parent=5 // pred_fallthru
        _
      %p325 = scmp.le.s32.totalorder 1, %s12
      %p326 = scmp.lt.s32.totalorder %s12, 3
      %p327 = pnand %p325, %p326
      %p328 = pneg %p327
      // Predicated region
      $region78: #{_attn_impl.1} parent=5 // pred_check
        _
      $region79: #{_attn_impl.1} parent=5 // pred_check_branch
        %330 = sbr.rel (%p327) target = $region81
      $region80: #{_attn_impl.1} parent=5 // pred_region
        %s331 = ssub.s32 %s12, 1
        %s332 = sand.u32 %s51, 1
        %s333 = sand.u32 %s51, 1
        %s334 = smul.addr %s333, 64
        %s335 = scalar_lea.vmem [#allocation3], %s334
        // Predicated region
        $region82: #{_attn_impl.1} parent=80 // pred_check
          %p336 = pneg %p64
        $region83: #{_attn_impl.1} parent=80 // pred_check_branch
          %338 = sbr.rel (%p336) target = $region85
        $region84: #{_attn_impl.1} parent=80 // pred_region
          _
        $region85: #{_attn_impl.1} parent=80 // pred_fallthru
          _
        %s339 = smul.u32 2, %s17
        %p340 = scmp.lt.s32.totalorder %s339, 3
        %s341 = scalar_select %p340, %s339, 3
        %s342 = smul.addr %s341, 4
        %s343 = scalar_lea.vmem %s0, %s342
        %p344 = pneg %p38
        %p345 = pneg %p35
        %s346 = sand.u32 %s51, 1
        %s347 = sand.u32 %s51, 1
        %s348 = smul.addr %s347, 64
        %s349 = scalar_lea.vmem [#allocation3], %s348
        %p350 = pneg %p64
        %p351 = pneg %p61
        %p352 = pneg %p85
        %p353 = pneg %p82
        %p354 = pneg %p106
        %p355 = pneg %p103
        %p356 = pneg %p127
        %p357 = pneg %p124
        %p358 = pneg %p148
        %p359 = pneg %p145
        %p360 = pneg %p174
        %p361 = pneg %p171
        %s362 = smul.u32 2, %s17
        %p363 = scmp.lt.s32.totalorder %s362, 3
        %s364 = scalar_select %p363, %s362, 3
        %s365 = smul.addr %s364, 8
        %s366 = scalar_lea.vmem %s6, %s365
        %s367 = smul.u32 2, %s17
        %p368 = scmp.lt.s32.totalorder %s367, 3
        %s369 = scalar_select %p368, %s367, 3
        %s370 = smul.addr %s369, 4
        %s371 = scalar_lea.vmem %s0, %s370
        %s372 = smul.u32 2, %s17
        %s373 = smul.u32 2, %s17
        %s374 = smul.u32 2, %s17
        %p375 = scmp.lt.s32.totalorder %s374, 3
        %s376 = scalar_select %p375, %s374, 3
        %s377 = smul.addr %s376, 8
        %s378 = scalar_lea.vmem %s6, %s377
        %s379 = smul.u32 2, %s17
        %v381 = vld [vmem:[%s371] sm:$0xf]
        %v382 = vld [vmem:[%s371 + $0x4] sm:$0xf]
        %v383 = vld [vmem:[%s2] sm:$0xf]
        %v384 = vld [vmem:[%s2 + $0x4] sm:$0xf]
        %v385 = vld [vmem:[%s2 + $0x8] sm:$0xf]
        %v386 = vld [vmem:[%s2 + $0xc] sm:$0xf]
        %v387 = vld [vmem:[%s4] sm:$0x1]
        %v389 = vlaneseq
        %v390 = vshrl.u32 %v389, 7
        %v391 = vsub.s32 0, %v390
        %v392 = vrot.slane %v387, %v391
        %v396 = vunpack.c.l.b16 %v381
        %v397 = vunpack.c.l.b16 %v382
        %v398 = vpack.c.b16 %v397, %v396
        %v403 = vunpack.c.l.b16 %v383
        %v404 = vunpack.c.l.b16 %v384
        %v405 = vunpack.c.l.b16 %v385
        %v406 = vunpack.c.l.b16 %v386
        %v407 = vpack.c.b16 %v404, %v403
        %v408 = vpack.c.b16 %v406, %v405
        %vm411 = vcmask 261120
        %v413 = vsel %vm411, %v398, 0
        %415 = vmatprep.subr.bf16.mxu0 0
        %416 = vmatpush1.bf16.msra.mxu0 0
        %417 = vmatprep.subr.bf16.mxu0 0
        %418 = vmatpush1.bf16.msra.mxu0 0
        %419 = vmatprep.subr.bf16.mxu0 0
        %420 = vmatpush1.bf16.msra.mxu0 0
        %421 = vmatprep.subr.bf16.mxu0 0
        %422 = vmatpush1.bf16.msra.mxu0 0
        %423 = vmatprep.subr.bf16.mxu0 0
        %424 = vmatpush1.bf16.msra.mxu0 0
        %425 = vmatprep.subr.bf16.mxu0 0
        %426 = vmatpush1.bf16.msra.mxu0 0
        %427 = vmatprep.subr.bf16.mxu0 0
        %428 = vmatpush1.bf16.msra.mxu0 %v408
        %429 = vmatprep.subr.bf16.mxu0 0
        %430 = vmatpush1.bf16.msra.mxu0 %v407
        %431 = vmatprep.subr.bf16.mxu0 0
        %432 = vmatpush2.bf16.msra.mxu0 0
        %433 = vmatprep.subr.bf16.mxu0 0
        %434 = vmatpush2.bf16.msra.mxu0 0
        %435 = vmatprep.subr.bf16.mxu0 0
        %436 = vmatpush2.bf16.msra.mxu0 0
        %437 = vmatprep.subr.bf16.mxu0 0
        %438 = vmatpush2.bf16.msra.mxu0 0
        %439 = vmatprep.subr.bf16.mxu0 0
        %440 = vmatpush2.bf16.msra.mxu0 0
        %441 = vmatprep.subr.bf16.mxu0 0
        %442 = vmatpush2.bf16.msra.mxu0 0
        %443 = vmatprep.subr.bf16.mxu0 0
        %444 = vmatpush2.bf16.msra.mxu0 0
        %445 = vmatprep.subr.bf16.mxu0 0
        %446 = vmatpush2.bf16.msra.mxu0 0
        %447 = vmatprep.mubr.bf16.mxu0 0
        %448 = vmatmul.mubr.bf16.gmra.mxu0 %v413
        %v449 = vpop.f32.mrf.mxu0
        %v450 = vadd.f32 %v392, %v449
        %v451 = vpop.f32.mrf.mxu0
        %v452 = vpop.f32.mrf.mxu0
        %v453 = vadd.f32 %v392, %v452
        %v454 = vpop.f32.mrf.mxu0
        %455 = vdwg.mxu0
        %v456 = vld [vmem:[%s5] sm:$0x1]
        %v457 = vld [vmem:[%s335] sm:$0xf]
        %v458 = vld [vmem:[%s335 + $0x4] sm:$0xf]
        %v459 = vld [vmem:[%s335 + $0x8] sm:$0xf]
        %v460 = vld [vmem:[%s335 + $0xc] sm:$0xf]
        %v461 = vld [vmem:[%s335 + $0x10] sm:$0xf]
        %v462 = vld [vmem:[%s335 + $0x14] sm:$0xf]
        %v463 = vld [vmem:[%s335 + $0x18] sm:$0xf]
        %v464 = vld [vmem:[%s335 + $0x1c] sm:$0xf]
        %v465 = vld [vmem:[%s335 + $0x20] sm:$0xf]
        %v466 = vld [vmem:[%s335 + $0x24] sm:$0xf]
        %v467 = vld [vmem:[%s335 + $0x28] sm:$0xf]
        %v468 = vld [vmem:[%s335 + $0x2c] sm:$0xf]
        %v469 = vld [vmem:[%s335 + $0x30] sm:$0xf]
        %v470 = vld [vmem:[%s335 + $0x34] sm:$0xf]
        %v471 = vld [vmem:[%s335 + $0x38] sm:$0xf]
        %v472 = vld [vmem:[%s335 + $0x3c] sm:$0xf]
        %v473 = vld [vmem:[%s3] sm:$0xf]
        %v474 = vld [vmem:[%s3 + $0x4] sm:$0xf]
        %v475 = vld [vmem:[%s3 + $0x8] sm:$0xf]
        %v476 = vld [vmem:[%s3 + $0xc] sm:$0xf]
        %v493 = vunpack.c.l.b16 %v457
        %v494 = vunpack.c.l.b16 %v458
        %v495 = vunpack.c.l.b16 %v459
        %v496 = vunpack.c.l.b16 %v460
        %v497 = vunpack.c.l.b16 %v461
        %v498 = vunpack.c.l.b16 %v462
        %v499 = vunpack.c.l.b16 %v463
        %v500 = vunpack.c.l.b16 %v464
        %v501 = vunpack.c.l.b16 %v465
        %v502 = vunpack.c.l.b16 %v466
        %v503 = vunpack.c.l.b16 %v467
        %v504 = vunpack.c.l.b16 %v468
        %v505 = vunpack.c.l.b16 %v469
        %v506 = vunpack.c.l.b16 %v470
        %v507 = vunpack.c.l.b16 %v471
        %v508 = vunpack.c.l.b16 %v472
        %v509 = vpack.c.b16 %v494, %v493
        %v510 = vpack.c.b16 %v496, %v495
        %v511 = vpack.c.b16 %v498, %v497
        %v512 = vpack.c.b16 %v500, %v499
        %v513 = vpack.c.b16 %v502, %v501
        %v514 = vpack.c.b16 %v504, %v503
        %v515 = vpack.c.b16 %v506, %v505
        %v516 = vpack.c.b16 %v508, %v507
        %v521 = vunpack.c.l.b16 %v473
        %v522 = vunpack.c.l.b16 %v474
        %v523 = vunpack.c.l.b16 %v475
        %v524 = vunpack.c.l.b16 %v476
        %v525 = vpack.c.b16 %v522, %v521
        %v526 = vpack.c.b16 %v524, %v523
        %v530 = vsel %vm411, %v509, 0
        %v533 = vsel %vm411, %v510, 0
        %v536 = vsel %vm411, %v511, 0
        %v539 = vsel %vm411, %v512, 0
        %v542 = vsel %vm411, %v513, 0
        %v545 = vsel %vm411, %v514, 0
        %v548 = vsel %vm411, %v515, 0
        %v551 = vsel %vm411, %v516, 0
        %553 = vmatprep.subr.bf16.mxu0 0
        %554 = vmatpush1.bf16.msra.mxu0 0
        %555 = vmatprep.subr.bf16.mxu0 0
        %556 = vmatpush1.bf16.msra.mxu0 0
        %557 = vmatprep.subr.bf16.mxu0 0
        %558 = vmatpush1.bf16.msra.mxu0 0
        %559 = vmatprep.subr.bf16.mxu0 0
        %560 = vmatpush1.bf16.msra.mxu0 0
        %561 = vmatprep.subr.bf16.mxu0 0
        %562 = vmatpush1.bf16.msra.mxu0 0
        %563 = vmatprep.subr.bf16.mxu0 0
        %564 = vmatpush1.bf16.msra.mxu0 0
        %565 = vmatprep.subr.bf16.mxu0 0
        %566 = vmatpush1.bf16.msra.mxu0 %v526
        %567 = vmatprep.subr.bf16.mxu0 0
        %568 = vmatpush1.bf16.msra.mxu0 %v525
        %569 = vmatprep.subr.bf16.mxu0 0
        %570 = vmatpush2.bf16.msra.mxu0 0
        %571 = vmatprep.subr.bf16.mxu0 0
        %572 = vmatpush2.bf16.msra.mxu0 0
        %573 = vmatprep.subr.bf16.mxu0 0
        %574 = vmatpush2.bf16.msra.mxu0 0
        %575 = vmatprep.subr.bf16.mxu0 0
        %576 = vmatpush2.bf16.msra.mxu0 0
        %577 = vmatprep.subr.bf16.mxu0 0
        %578 = vmatpush2.bf16.msra.mxu0 0
        %579 = vmatprep.subr.bf16.mxu0 0
        %580 = vmatpush2.bf16.msra.mxu0 0
        %581 = vmatprep.subr.bf16.mxu0 0
        %582 = vmatpush2.bf16.msra.mxu0 0
        %583 = vmatprep.subr.bf16.mxu0 0
        %584 = vmatpush2.bf16.msra.mxu0 0
        %585 = vmatprep.mubr.bf16.mxu0 0
        %586 = vmatmul.mubr.bf16.gmra.mxu0 %v530
        %v587 = vpop.f32.mrf.mxu0
        %v588 = vadd.f32 0.0, %v587
        %v589 = vpop.f32.mrf.mxu0
        %v590 = vpop.f32.mrf.mxu0
        %v591 = vadd.f32 0.0, %v590
        %v592 = vpop.f32.mrf.mxu0
        %593 = vmatprep.mubr.bf16.mxu0 0
        %594 = vmatmul.mubr.bf16.gmra.mxu0 %v533
        %v595 = vpop.f32.mrf.mxu0
        %v596 = vadd.f32 0.0, %v595
        %v597 = vpop.f32.mrf.mxu0
        %v598 = vpop.f32.mrf.mxu0
        %v599 = vadd.f32 0.0, %v598
        %v600 = vpop.f32.mrf.mxu0
        %601 = vmatprep.mubr.bf16.mxu0 0
        %602 = vmatmul.mubr.bf16.gmra.mxu0 %v536
        %v603 = vpop.f32.mrf.mxu0
        %v604 = vadd.f32 0.0, %v603
        %v605 = vpop.f32.mrf.mxu0
        %v606 = vpop.f32.mrf.mxu0
        %v607 = vadd.f32 0.0, %v606
        %v608 = vpop.f32.mrf.mxu0
        %609 = vmatprep.mubr.bf16.mxu0 0
        %610 = vmatmul.mubr.bf16.gmra.mxu0 %v539
        %v611 = vpop.f32.mrf.mxu0
        %v612 = vadd.f32 0.0, %v611
        %v613 = vpop.f32.mrf.mxu0
        %v614 = vpop.f32.mrf.mxu0
        %v615 = vadd.f32 0.0, %v614
        %v616 = vpop.f32.mrf.mxu0
        %617 = vmatprep.mubr.bf16.mxu0 0
        %618 = vmatmul.mubr.bf16.gmra.mxu0 %v542
        %v619 = vpop.f32.mrf.mxu0
        %v620 = vadd.f32 0.0, %v619
        %v621 = vpop.f32.mrf.mxu0
        %v622 = vpop.f32.mrf.mxu0
        %v623 = vadd.f32 0.0, %v622
        %v624 = vpop.f32.mrf.mxu0
        %625 = vmatprep.mubr.bf16.mxu0 0
        %626 = vmatmul.mubr.bf16.gmra.mxu0 %v545
        %v627 = vpop.f32.mrf.mxu0
        %v628 = vadd.f32 0.0, %v627
        %v629 = vpop.f32.mrf.mxu0
        %v630 = vpop.f32.mrf.mxu0
        %v631 = vadd.f32 0.0, %v630
        %v632 = vpop.f32.mrf.mxu0
        %633 = vmatprep.mubr.bf16.mxu0 0
        %634 = vmatmul.mubr.bf16.gmra.mxu0 %v548
        %v635 = vpop.f32.mrf.mxu0
        %v636 = vadd.f32 0.0, %v635
        %v637 = vpop.f32.mrf.mxu0
        %v638 = vpop.f32.mrf.mxu0
        %v639 = vadd.f32 0.0, %v638
        %v640 = vpop.f32.mrf.mxu0
        %641 = vmatprep.mubr.bf16.mxu0 0
        %642 = vmatmul.mubr.bf16.gmra.mxu0 %v551
        %v643 = vpop.f32.mrf.mxu0
        %v644 = vadd.f32 0.0, %v643
        %v645 = vpop.f32.mrf.mxu0
        %v646 = vpop.f32.mrf.mxu0
        %v647 = vadd.f32 0.0, %v646
        %v648 = vpop.f32.mrf.mxu0
        %649 = vdwg.mxu0
        %v650 = vadd.f32 %v588, %v450
        %v651 = vadd.f32 %v591, %v453
        %v652 = vadd.f32 %v596, %v450
        %v653 = vadd.f32 %v599, %v453
        %v654 = vadd.f32 %v604, %v450
        %v655 = vadd.f32 %v607, %v453
        %v656 = vadd.f32 %v612, %v450
        %v657 = vadd.f32 %v615, %v453
        %v658 = vadd.f32 %v620, %v450
        %v659 = vadd.f32 %v623, %v453
        %v660 = vadd.f32 %v628, %v450
        %v661 = vadd.f32 %v631, %v453
        %v662 = vadd.f32 %v636, %v450
        %v663 = vadd.f32 %v639, %v453
        %v664 = vadd.f32 %v644, %v450
        %v665 = vadd.f32 %v647, %v453
        %v666 = vtanh.pop %v650
        %v667 = vtanh.pop %v651
        %v668 = vtanh.pop %v652
        %v669 = vtanh.pop %v653
        %v670 = vtanh.pop %v654
        %v671 = vtanh.pop %v655
        %v672 = vtanh.pop %v656
        %v673 = vtanh.pop %v657
        %v674 = vtanh.pop %v658
        %v675 = vtanh.pop %v659
        %v676 = vtanh.pop %v660
        %v677 = vtanh.pop %v661
        %v678 = vtanh.pop %v662
        %v679 = vtanh.pop %v663
        %v680 = vtanh.pop %v664
        %v681 = vtanh.pop %v665
        %v683 = vlaneseq
        %v684 = vshrl.u32 %v683, 7
        %v685 = vsub.s32 0, %v684
        %v686 = vrot.slane %v456, %v685
        %v688 = vmul.f32 %v666, %v686
        %v689 = vmul.f32 %v667, %v686
        %v690 = vmul.f32 %v668, %v686
        %v691 = vmul.f32 %v669, %v686
        %v692 = vmul.f32 %v670, %v686
        %v693 = vmul.f32 %v671, %v686
        %v694 = vmul.f32 %v672, %v686
        %v695 = vmul.f32 %v673, %v686
        %v696 = vmul.f32 %v674, %v686
        %v697 = vmul.f32 %v675, %v686
        %v698 = vmul.f32 %v676, %v686
        %v699 = vmul.f32 %v677, %v686
        %v700 = vmul.f32 %v678, %v686
        %v701 = vmul.f32 %v679, %v686
        %v702 = vmul.f32 %v680, %v686
        %v703 = vmul.f32 %v681, %v686
        %v704 = vsel %vm411, %v688, 0.0
        %705 = vadd.xlane.f32.xlu0 %v704
        %v706 = vpop.xlane.xlu0 %705
        %v707 = vsel %vm411, %v689, 0.0
        %708 = vadd.xlane.f32.xlu0 %v707
        %v709 = vpop.xlane.xlu0 %708
        %v710 = vsel %vm411, %v690, 0.0
        %711 = vadd.xlane.f32.xlu0 %v710
        %v712 = vpop.xlane.xlu0 %711
        %v713 = vsel %vm411, %v691, 0.0
        %714 = vadd.xlane.f32.xlu0 %v713
        %v715 = vpop.xlane.xlu0 %714
        %v716 = vsel %vm411, %v692, 0.0
        %717 = vadd.xlane.f32.xlu0 %v716
        %v718 = vpop.xlane.xlu0 %717
        %v719 = vsel %vm411, %v693, 0.0
        %720 = vadd.xlane.f32.xlu0 %v719
        %v721 = vpop.xlane.xlu0 %720
        %v722 = vsel %vm411, %v694, 0.0
        %723 = vadd.xlane.f32.xlu0 %v722
        %v724 = vpop.xlane.xlu0 %723
        %v725 = vsel %vm411, %v695, 0.0
        %726 = vadd.xlane.f32.xlu0 %v725
        %v727 = vpop.xlane.xlu0 %726
        %v728 = vsel %vm411, %v696, 0.0
        %729 = vadd.xlane.f32.xlu0 %v728
        %v730 = vpop.xlane.xlu0 %729
        %v731 = vsel %vm411, %v697, 0.0
        %732 = vadd.xlane.f32.xlu0 %v731
        %v733 = vpop.xlane.xlu0 %732
        %v734 = vsel %vm411, %v698, 0.0
        %735 = vadd.xlane.f32.xlu0 %v734
        %v736 = vpop.xlane.xlu0 %735
        %v737 = vsel %vm411, %v699, 0.0
        %738 = vadd.xlane.f32.xlu0 %v737
        %v739 = vpop.xlane.xlu0 %738
        %v740 = vsel %vm411, %v700, 0.0
        %741 = vadd.xlane.f32.xlu0 %v740
        %v742 = vpop.xlane.xlu0 %741
        %v743 = vsel %vm411, %v701, 0.0
        %744 = vadd.xlane.f32.xlu0 %v743
        %v745 = vpop.xlane.xlu0 %744
        %v746 = vsel %vm411, %v702, 0.0
        %747 = vadd.xlane.f32.xlu0 %v746
        %v748 = vpop.xlane.xlu0 %747
        %v749 = vsel %vm411, %v703, 0.0
        %750 = vadd.xlane.f32.xlu0 %v749
        %v751 = vpop.xlane.xlu0 %750
        %v768 = vlaneseq
        %v769 = vand.u32 %v768, 127
        %v770 = vlaneseq
        %v771 = vshrl.u32 %v770, 7
        %v772 = vsub.s32 %v769, %v771
        %v773 = vrot.slane %v706, %v772
        %v774 = vadd.s32 %v769, 4294967288
        %v775 = vlaneseq
        %v776 = vshrl.u32 %v775, 7
        %v777 = vsub.s32 %v774, %v776
        %v778 = vrot.slane %v709, %v777
        %vm779 = vcmask 130112
        %v780 = vsel %vm779, %v778, %v773
        %v781 = vlaneseq
        %v782 = vshrl.u32 %v781, 7
        %v783 = vsub.s32 %v769, %v782
        %v784 = vrot.slane %v712, %v783
        %v785 = vlaneseq
        %v786 = vshrl.u32 %v785, 7
        %v787 = vsub.s32 %v774, %v786
        %v788 = vrot.slane %v715, %v787
        %v789 = vsel %vm779, %v788, %v784
        %v790 = vlaneseq
        %v791 = vshrl.u32 %v790, 7
        %v792 = vsub.s32 %v769, %v791
        %v793 = vrot.slane %v718, %v792
        %v794 = vlaneseq
        %v795 = vshrl.u32 %v794, 7
        %v796 = vsub.s32 %v774, %v795
        %v797 = vrot.slane %v721, %v796
        %v798 = vsel %vm779, %v797, %v793
        %v799 = vlaneseq
        %v800 = vshrl.u32 %v799, 7
        %v801 = vsub.s32 %v769, %v800
        %v802 = vrot.slane %v724, %v801
        %v803 = vlaneseq
        %v804 = vshrl.u32 %v803, 7
        %v805 = vsub.s32 %v774, %v804
        %v806 = vrot.slane %v727, %v805
        %v807 = vsel %vm779, %v806, %v802
        %v808 = vlaneseq
        %v809 = vshrl.u32 %v808, 7
        %v810 = vsub.s32 %v769, %v809
        %v811 = vrot.slane %v730, %v810
        %v812 = vlaneseq
        %v813 = vshrl.u32 %v812, 7
        %v814 = vsub.s32 %v774, %v813
        %v815 = vrot.slane %v733, %v814
        %v816 = vsel %vm779, %v815, %v811
        %v817 = vlaneseq
        %v818 = vshrl.u32 %v817, 7
        %v819 = vsub.s32 %v769, %v818
        %v820 = vrot.slane %v736, %v819
        %v821 = vlaneseq
        %v822 = vshrl.u32 %v821, 7
        %v823 = vsub.s32 %v774, %v822
        %v824 = vrot.slane %v739, %v823
        %v825 = vsel %vm779, %v824, %v820
        %v826 = vlaneseq
        %v827 = vshrl.u32 %v826, 7
        %v828 = vsub.s32 %v769, %v827
        %v829 = vrot.slane %v742, %v828
        %v830 = vlaneseq
        %v831 = vshrl.u32 %v830, 7
        %v832 = vsub.s32 %v774, %v831
        %v833 = vrot.slane %v745, %v832
        %v834 = vsel %vm779, %v833, %v829
        %v835 = vlaneseq
        %v836 = vshrl.u32 %v835, 7
        %v837 = vsub.s32 %v769, %v836
        %v838 = vrot.slane %v748, %v837
        %v839 = vlaneseq
        %v840 = vshrl.u32 %v839, 7
        %v841 = vsub.s32 %v774, %v840
        %v842 = vrot.slane %v751, %v841
        %v843 = vsel %vm779, %v842, %v838
        %vm844 = vcmask 1041409
        %v845 = vsel %vm844, %v789, %v780
        %vm846 = vcmask 1042434
        %v847 = vsel %vm846, %v798, %v845
        %vm848 = vcmask 1043459
        %v849 = vsel %vm848, %v807, %v847
        %vm850 = vcmask 1044484
        %v851 = vsel %vm850, %v816, %v849
        %vm852 = vcmask 1045509
        %v853 = vsel %vm852, %v825, %v851
        %vm854 = vcmask 1046534
        %v855 = vsel %vm854, %v834, %v853
        %vm856 = vcmask 1047559
        %v857 = vsel %vm856, %v843, %v855
        %vm859 = vcmask 130048
        %860 = vst.msk [vmem:[#allocation2] sm:$0xff] %vm859, %v857
        %v861 = vld [vmem:[#allocation2] sm:$0xff]
        %862 = vxpose.xlu0.b32.start [1/16] %v861, 128
        %863 = vxpose.xlu0.b32.cont [2/16] 0.0, 128
        %864 = vxpose.xlu0.b32.cont [3/16] 0.0, 128
        %865 = vxpose.xlu0.b32.cont [4/16] 0.0, 128
        %866 = vxpose.xlu0.b32.cont [5/16] 0.0, 128
        %867 = vxpose.xlu0.b32.cont [6/16] 0.0, 128
        %868 = vxpose.xlu0.b32.cont [7/16] 0.0, 128
        %869 = vxpose.xlu0.b32.cont [8/16] 0.0, 128
        %870 = vxpose.xlu0.b32.cont [9/16] 0.0, 128
        %871 = vxpose.xlu0.b32.cont [10/16] 0.0, 128
        %872 = vxpose.xlu0.b32.cont [11/16] 0.0, 128
        %873 = vxpose.xlu0.b32.cont [12/16] 0.0, 128
        %874 = vxpose.xlu0.b32.cont [13/16] 0.0, 128
        %875 = vxpose.xlu0.b32.cont [14/16] 0.0, 128
        %876 = vxpose.xlu0.b32.cont [15/16] 0.0, 128
        %877 = vxpose.xlu0.b32.end [16/16] 0.0, 128
        %v878 = vpop.trf.xlu0
        %v879 = vpop.trf.xlu0
        %v880 = vpop.trf.xlu0
        %v881 = vpop.trf.xlu0
        %v882 = vpop.trf.xlu0
        %v883 = vpop.trf.xlu0
        %v884 = vpop.trf.xlu0
        %v885 = vpop.trf.xlu0
        %v886 = vpop.trf.xlu0
        %v887 = vpop.trf.xlu0
        %v888 = vpop.trf.xlu0
        %v889 = vpop.trf.xlu0
        %v890 = vpop.trf.xlu0
        %v891 = vpop.trf.xlu0
        %v892 = vpop.trf.xlu0
        %v893 = vpop.trf.xlu0
        %vm894 = vcmask 64512
        %v895 = vsel %vm894, %v878, -inf
        %896 = vmax.xlane.f32.xlu0 %v895
        %v897 = vpop.xlane.xlu0 %896
        %v898 = vsel %vm894, %v879, -inf
        %899 = vmax.xlane.f32.xlu0 %v898
        %v900 = vpop.xlane.xlu0 %899
        %v901 = vsub.f32 %v878, %v897
        %v902 = vsub.f32 %v879, %v900
        %v903 = vmul.f32 %v901, 1.442695
        %v904 = vpow.pop %v903
        %v905 = vmul.f32 %v902, 1.442695
        %v906 = vpow.pop %v905
        %v907 = vsel %vm894, %v904, 0.0
        %908 = vadd.xlane.f32.xlu0 %v907
        %v909 = vpop.xlane.xlu0 %908
        %v910 = vsel %vm894, %v906, 0.0
        %911 = vadd.xlane.f32.xlu0 %v910
        %v912 = vpop.xlane.xlu0 %911
        %v913 = vrcp.pop %v909
        %v914 = vmul.f32 %v904, %v913
        %v915 = vrcp.pop %v912
        %v916 = vmul.f32 %v906, %v915
        %917 = vst.msk [vmem:[%s378] sm:$0xff] %vm894, %v914
        %918 = vst.msk [vmem:[%s378 + $0x8] sm:$0xff] %vm894, %v916
        %s919 = smul.u32 2, %s17
        %p920 = scmp.lt.s32.totalorder %s919, 3
        %s921 = scalar_select %p920, %s919, 3
        %s922 = smul.addr %s921, 8
        %s923 = scalar_lea.vmem %s6, %s922
        // Predicated region
        $region86: #{_attn_impl.1} parent=80 // pred_check
          %p924 = pneg %p171
        $region87: #{_attn_impl.1} parent=80 // pred_check_branch
          %926 = sbr.rel (%p924) target = $region89
        $region88: #{_attn_impl.1} parent=80 // pred_region
          %s927 = smul.u32 2, %s17
        $region89: #{_attn_impl.1} parent=80 // pred_fallthru
          _
      $region81: #{_attn_impl.1} parent=5 // pred_fallthru
        _
      %p928 = scmp.le.s32.totalorder 2, %s12
      // Predicated region
      $region90: #{_attn_impl.1} parent=5 // pred_check
        %p929 = pneg %p928
      $region91: #{_attn_impl.1} parent=5 // pred_check_branch
        %931 = sbr.rel (%p929) target = $region93
      $region92: #{_attn_impl.1} parent=5 // pred_region
        %s932 = ssub.s32 %s12, 2
        // Predicated region
        $region94: #{_attn_impl.1} parent=92 // pred_check
          %p933 = pneg %p177
        $region95: #{_attn_impl.1} parent=92 // pred_check_branch
          %935 = sbr.rel (%p933) target = $region97
        $region96: #{_attn_impl.1} parent=92 // pred_region
          %s936 = smul.u32 2, %s18
          %p937 = scmp.lt.s32.totalorder %s936, 3
          %s938 = scalar_select %p937, %s936, 3
          %s939 = smul.addr %s938, 8
          %s940 = scalar_lea.vmem %s6, %s939
        $region97: #{_attn_impl.1} parent=92 // pred_fallthru
          _
      $region93: #{_attn_impl.1} parent=5 // pred_fallthru
        _
    $region6: #{_attn_impl.1} parent=1 // loop_footer
      %s16 = sadd.s32 1, %s12
    $region7: #{_attn_impl.1} parent=1 // loop_footer_branch
      %11 = sbr.rel target = $region3
    $region8: #{_attn_impl.1} parent=1 // loop_exit
      _

</llo_original>
